<compile_context>
chip_gen: v5e
topology: v5e:2x2
jax: 0.10.0
libtpu: 0.0.40
codegen_flags: <defaults>
</compile_context>

<pallas_src>
import jax
import jax.numpy as jnp
from jax.experimental import pallas as pl
from jax.experimental.pallas import tpu as pltpu

LANE = 128


def _round_up(n, m):
    return (n + m - 1) // m * m


def dan_kernel(xt_ref, w1_ref, b1_ref, w2_ref, b2_ref, w3_ref, b3_ref, o_ref):
    # Transposed layout: everything is [features, batch_tile]; batch on lanes.
    xt = xt_ref[...]                                                   # [Dp, TB]
    h1 = jnp.dot(w1_ref[...], xt, preferred_element_type=jnp.float32)  # [256, TB]
    h1 = jnp.maximum(h1 + b1_ref[...], 0.0)                            # relu (dropout = identity, eval)
    h2 = jnp.dot(w2_ref[...], h1.astype(w2_ref.dtype),
                 preferred_element_type=jnp.float32)                   # [128, TB]
    h2 = jnp.maximum(h2 + b2_ref[...], 0.0)                            # relu (dropout = identity, eval)
    logits = jnp.dot(w3_ref[...], h2.astype(w3_ref.dtype),
                     preferred_element_type=jnp.float32)               # [1, TB]
    logits = logits + b3_ref[0, 0]                                     # scalar bias from SMEM
    o_ref[...] = jax.nn.sigmoid(logits)                                # lane-dense store


def dan_forward(x, params, *, tile_b=256, compute_dtype=jnp.bfloat16):
    """x: [B, D_in] f32.  params in PyTorch layout:
       w1 [256, D_in], b1 [256], w2 [128, 256], b2 [128], w3 [1, 128], b3 [1]."""
    w1, b1, w2, b2, w3, b3 = params
    B, d_in = x.shape
    h1_dim = w1.shape[0]
    h2_dim = w2.shape[0]
    out_dim = w3.shape[0]
    assert out_dim == 1, "SMEM scalar-bias path assumes output_dim == 1"

    d_pad = _round_up(d_in, LANE)          # 300 -> 384: pay padding once, explicitly
    b_pad = _round_up(B, tile_b)           # batch tiled along the lane axis

    # Wrapper-side layout plumbing: transpose + zero-pad x, pad W1 columns.
    xt = jnp.zeros((d_pad, b_pad), compute_dtype)
    xt = xt.at[:d_in, :B].set(x.T.astype(compute_dtype))
    w1p = jnp.zeros((h1_dim, d_pad), compute_dtype)
    w1p = w1p.at[:, :d_in].set(w1.astype(compute_dtype))
    w2c = w2.astype(compute_dtype)
    w3c = w3.astype(compute_dtype)
    b1c = b1.reshape(h1_dim, 1).astype(jnp.float32)
    b2c = b2.reshape(h2_dim, 1).astype(jnp.float32)
    b3c = b3.reshape(1, out_dim).astype(jnp.float32)

    grid = (b_pad // tile_b,)
    resident = lambda shape: pl.BlockSpec(shape, lambda i: (0,) * len(shape))
    itemsize = jnp.dtype(compute_dtype).itemsize

    flops = 2 * b_pad * (d_pad * h1_dim + h1_dim * h2_dim + h2_dim * out_dim)
    bytes_accessed = (
        xt.size * itemsize
        + (w1p.size + w2c.size + w3c.size) * itemsize
        + (b1c.size + b2c.size + b3c.size) * 4
        + out_dim * b_pad * 4
    )

    yt = pl.pallas_call(
        dan_kernel,
        out_shape=jax.ShapeDtypeStruct((out_dim, b_pad), jnp.float32),
        grid=grid,
        in_specs=[
            pl.BlockSpec((d_pad, tile_b), lambda i: (0, i)),  # x^T tile (double-buffered)
            resident((h1_dim, d_pad)),                        # W1 (VMEM-resident)
            resident((h1_dim, 1)),                            # b1
            resident((h2_dim, h1_dim)),                       # W2
            resident((h2_dim, 1)),                            # b2
            resident((out_dim, h2_dim)),                      # W3
            pl.BlockSpec(memory_space=pltpu.MemorySpace.SMEM),  # b3 scalar
        ],
        out_specs=pl.BlockSpec((out_dim, tile_b), lambda i: (0, i)),  # lane-dense (1, TB)
        compiler_params=pltpu.CompilerParams(
            dimension_semantics=("parallel",),                # megacore split on v7x
        ),
        cost_estimate=pl.CostEstimate(
            flops=flops,
            transcendentals=b_pad * out_dim,
            bytes_accessed=bytes_accessed,
        ),
    )(xt, w1p, b1c, w2c, b2c, w3c, b3c)

    return yt[:, :B].T  # back to [B, out_dim]


def init_params(key, input_dim=300, output_dim=1):
    # PyTorch-style uniform(-1/sqrt(fan_in), 1/sqrt(fan_in)) init, [out, in] layout.
    dims = [(input_dim, 256), (256, 128), (128, output_dim)]
    params = []
    for fan_in, fan_out in dims:
        key, kw, kb = jax.random.split(key, 3)
        bound = 1.0 / jnp.sqrt(fan_in)
        w = jax.random.uniform(kw, (fan_out, fan_in), jnp.float32, -bound, bound)
        b = jax.random.uniform(kb, (fan_out,), jnp.float32, -bound, bound)
        params += [w, b]
    return tuple(params)


def reference_forward_f32(x, params):
    w1, b1, w2, b2, w3, b3 = params
    h1 = jnp.maximum(x @ w1.T + b1, 0.0)
    h2 = jnp.maximum(h1 @ w2.T + b2, 0.0)
    return jax.nn.sigmoid(h2 @ w3.T + b3)


def reference_forward_matched(x, params, compute_dtype):
    # Same dtype regime as the kernel: casts to compute_dtype, f32 accumulation.
    w1, b1, w2, b2, w3, b3 = params
    cd = compute_dtype
    h1 = jnp.maximum(
        jnp.dot(x.astype(cd), w1.astype(cd).T, preferred_element_type=jnp.float32) + b1, 0.0)
    h2 = jnp.maximum(
        jnp.dot(h1.astype(cd), w2.astype(cd).T, preferred_element_type=jnp.float32) + b2, 0.0)
    logits = jnp.dot(h2.astype(cd), w3.astype(cd).T, preferred_element_type=jnp.float32) + b3
    return jax.nn.sigmoid(logits)


if __name__ == "__main__":
    key = jax.random.PRNGKey(0)
    key, kx = jax.random.split(key)

    B, D_IN, D_OUT = 512, 300, 1           # 2 grid steps with tile_b=256
    x = jax.random.normal(kx, (B, D_IN), jnp.float32)
    params = init_params(key, D_IN, D_OUT)

    # 1) f32 path — exact reference semantics.
    y32 = dan_forward(x, params, tile_b=256, compute_dtype=jnp.float32)
    jax.block_until_ready(y32)
    y_ref = reference_forward_f32(x, params)
    assert y32.shape == (B, D_OUT)
    assert jnp.allclose(y32, y_ref, atol=2e-5, rtol=1e-5)

    # 2) bf16 fast path (v6e/v7x MXU) with f32 accumulation.
    ybf = dan_forward(x, params, tile_b=256, compute_dtype=jnp.bfloat16)
    jax.block_until_ready(ybf)
    y_ref_bf = reference_forward_matched(x, params, jnp.bfloat16)
    assert ybf.shape == (B, D_OUT)
    assert jnp.allclose(ybf, y_ref_bf, atol=2e-3, rtol=0)
    assert jnp.allclose(ybf, y_ref, atol=5e-2, rtol=0)   # vs full-f32 reference

    print("KERNEL_OK")
</pallas_src>

<mosaic_0001>
module attributes {stable_mosaic.version = 11 : i64} {
  func.func @dan_kernel(%arg0: i32, %arg1: memref<384x256xf32, #tpu.memory_space<vmem>>, %arg2: memref<256x384xf32, #tpu.memory_space<vmem>>, %arg3: memref<256x1xf32, #tpu.memory_space<vmem>>, %arg4: memref<128x256xf32, #tpu.memory_space<vmem>>, %arg5: memref<128x1xf32, #tpu.memory_space<vmem>>, %arg6: memref<1x128xf32, #tpu.memory_space<vmem>>, %arg7: memref<1x1xf32, #tpu.memory_space<smem>>, %arg8: memref<1x256xf32, #tpu.memory_space<vmem>>) attributes {dimension_semantics = [#tpu.dimension_semantics<parallel>], iteration_bounds = array<i64: 2>, scalar_prefetch = 0 : i64, scratch_operands = 0 : i64, tpu.core_type = #tpu.core_type<tc>, window_params = [{transform_indices = @transform_0, window_bounds = array<i64: 384, 256>}, {pipeline_mode = #tpu.pipeline_mode<synchronous>, transform_indices = @transform_1, window_bounds = array<i64: 256, 384>}, {pipeline_mode = #tpu.pipeline_mode<synchronous>, transform_indices = @transform_2, window_bounds = array<i64: 256, 1>}, {pipeline_mode = #tpu.pipeline_mode<synchronous>, transform_indices = @transform_3, window_bounds = array<i64: 128, 256>}, {pipeline_mode = #tpu.pipeline_mode<synchronous>, transform_indices = @transform_4, window_bounds = array<i64: 128, 1>}, {pipeline_mode = #tpu.pipeline_mode<synchronous>, transform_indices = @transform_5, window_bounds = array<i64: 1, 128>}, {transform_indices = @transform_6, window_bounds = array<i64: 1, 1>}, {transform_indices = @transform_7, window_bounds = array<i64: 1, 256>}]} {
    %c0 = arith.constant 0 : index
    %c0_0 = arith.constant 0 : index
    %0 = vector.load %arg1[%c0, %c0_0] : memref<384x256xf32, #tpu.memory_space<vmem>>, vector<384x256xf32>
    %c0_1 = arith.constant 0 : index
    %c0_2 = arith.constant 0 : index
    %1 = vector.load %arg2[%c0_1, %c0_2] : memref<256x384xf32, #tpu.memory_space<vmem>>, vector<256x384xf32>
    %cst = arith.constant dense<0.000000e+00> : vector<256x256xf32>
    %2 = tpu.matmul %1, %0, %cst {dimension_numbers = #tpu.dot_dimension_numbers<[1], [0], [0], [1], [0, 0, 1, 1], [], []>} : vector<256x384xf32>, vector<384x256xf32>, vector<256x256xf32> -> vector<256x256xf32>
    %c0_3 = arith.constant 0 : index
    %c0_4 = arith.constant 0 : index
    %3 = vector.load %arg3[%c0_3, %c0_4] : memref<256x1xf32, #tpu.memory_space<vmem>>, vector<256x1xf32>
    %4 = vector.broadcast %3 : vector<256x1xf32> to vector<256x256xf32>
    %5 = arith.addf %2, %4 : vector<256x256xf32>
    %cst_5 = arith.constant 0.000000e+00 : f32
    %6 = vector.broadcast %cst_5 : f32 to vector<256x256xf32>
    %7 = arith.maximumf %5, %6 : vector<256x256xf32>
    %c0_6 = arith.constant 0 : index
    %c0_7 = arith.constant 0 : index
    %8 = vector.load %arg4[%c0_6, %c0_7] : memref<128x256xf32, #tpu.memory_space<vmem>>, vector<128x256xf32>
    %cst_8 = arith.constant dense<0.000000e+00> : vector<128x256xf32>
    %9 = tpu.matmul %8, %7, %cst_8 {dimension_numbers = #tpu.dot_dimension_numbers<[1], [0], [0], [1], [0, 0, 1, 1], [], []>} : vector<128x256xf32>, vector<256x256xf32>, vector<128x256xf32> -> vector<128x256xf32>
    %c0_9 = arith.constant 0 : index
    %c0_10 = arith.constant 0 : index
    %10 = vector.load %arg5[%c0_9, %c0_10] : memref<128x1xf32, #tpu.memory_space<vmem>>, vector<128x1xf32>
    %11 = vector.broadcast %10 : vector<128x1xf32> to vector<128x256xf32>
    %12 = arith.addf %9, %11 : vector<128x256xf32>
    %cst_11 = arith.constant 0.000000e+00 : f32
    %13 = vector.broadcast %cst_11 : f32 to vector<128x256xf32>
    %14 = arith.maximumf %12, %13 : vector<128x256xf32>
    %c0_12 = arith.constant 0 : index
    %c0_13 = arith.constant 0 : index
    %15 = vector.load %arg6[%c0_12, %c0_13] : memref<1x128xf32, #tpu.memory_space<vmem>>, vector<1x128xf32>
    %cst_14 = arith.constant dense<0.000000e+00> : vector<1x256xf32>
    %16 = tpu.matmul %15, %14, %cst_14 {dimension_numbers = #tpu.dot_dimension_numbers<[1], [0], [0], [1], [0, 0, 1, 1], [], []>} : vector<1x128xf32>, vector<128x256xf32>, vector<1x256xf32> -> vector<1x256xf32>
    %c0_15 = arith.constant 0 : index
    %c0_16 = arith.constant 0 : index
    %17 = memref.load %arg7[%c0_15, %c0_16] : memref<1x1xf32, #tpu.memory_space<smem>>
    %18 = vector.broadcast %17 : f32 to vector<1x256xf32>
    %19 = arith.addf %16, %18 : vector<1x256xf32>
    %20 = arith.negf %19 : vector<1x256xf32>
    %21 = math.exp %20 : vector<1x256xf32>
    %cst_17 = arith.constant 1.000000e+00 : f32
    %22 = vector.broadcast %cst_17 : f32 to vector<1x256xf32>
    %23 = arith.addf %22, %21 : vector<1x256xf32>
    %24 = arith.divf %22, %23 : vector<1x256xf32>
    %c0_18 = arith.constant 0 : index
    %c0_19 = arith.constant 0 : index
    %25 = vector.load %arg8[%c0_18, %c0_19] : memref<1x256xf32, #tpu.memory_space<vmem>>, vector<1x256xf32>
    tpu.vector_store %arg8[%c0_18, %c0_19], %24 {strides = array<i32>} : memref<1x256xf32, #tpu.memory_space<vmem>>, vector<1x256xf32>,
    return
  }
  func.func @transform_0(%arg0: i32) -> (i32, i32) {
    %c0_i32 = arith.constant 0 : i32
    %c0_i32_0 = arith.constant 0 : i32
    return %c0_i32, %arg0 : i32, i32
  }
  func.func @transform_1(%arg0: i32) -> (i32, i32) {
    %c0_i32 = arith.constant 0 : i32
    %c0_i32_0 = arith.constant 0 : i32
    %c0_i32_1 = arith.constant 0 : i32
    return %c0_i32, %c0_i32_0 : i32, i32
  }
  func.func @transform_2(%arg0: i32) -> (i32, i32) {
    %c0_i32 = arith.constant 0 : i32
    %c0_i32_0 = arith.constant 0 : i32
    %c0_i32_1 = arith.constant 0 : i32
    return %c0_i32, %c0_i32_0 : i32, i32
  }
  func.func @transform_3(%arg0: i32) -> (i32, i32) {
    %c0_i32 = arith.constant 0 : i32
    %c0_i32_0 = arith.constant 0 : i32
    %c0_i32_1 = arith.constant 0 : i32
    return %c0_i32, %c0_i32_0 : i32, i32
  }
  func.func @transform_4(%arg0: i32) -> (i32, i32) {
    %c0_i32 = arith.constant 0 : i32
    %c0_i32_0 = arith.constant 0 : i32
    %c0_i32_1 = arith.constant 0 : i32
    return %c0_i32, %c0_i32_0 : i32, i32
  }
  func.func @transform_5(%arg0: i32) -> (i32, i32) {
    %c0_i32 = arith.constant 0 : i32
    %c0_i32_0 = arith.constant 0 : i32
    %c0_i32_1 = arith.constant 0 : i32
    return %c0_i32, %c0_i32_0 : i32, i32
  }
  func.func @transform_6(%arg0: i32) -> (i32, i32) {
    %c0_i32 = arith.constant 0 : i32
    %c0_i32_0 = arith.constant 0 : i32
    %c0_i32_1 = arith.constant 0 : i32
    return %c0_i32, %c0_i32_0 : i32, i32
  }
  func.func @transform_7(%arg0: i32) -> (i32, i32) {
    %c0_i32 = arith.constant 0 : i32
    %c0_i32_0 = arith.constant 0 : i32
    return %c0_i32, %arg0 : i32, i32
  }
}

</mosaic_0001>

<llo_original>
// kernel: tpu_custom_call.1
$region0: #{tpu_custom_call.1}
  #allocation0 [shape = 'u32[]', space=smem, size = 0x4, offset = 0x4, fixed_abs, tag = 'smem constant byte address 0x4 - core index']
  #allocation1 [shape = 'u32[72,128]{1,0:T(1,128)}', space=vmem, size = 0x9000, scoped, tag = 'internal scratch']
  #allocation2 [shape = 'f32[1,1]{1,0:T(1,128)S(6)}', space=smem, size = 0x200, scoped, tag = 'scoped memory for tpu_custom_call.1']
  %s0 = inlined_call_operand.hbm [shape: f32[384,512], index: 0, kind: input, shape index: {}]
  %s1 = inlined_call_operand.hbm [shape: f32[256,384], index: 1, kind: input, shape index: {}]
  %s2 = inlined_call_operand.vmem [shape: f32[256,1], index: 2, kind: input, shape index: {}]
  %s3 = inlined_call_operand.vmem [shape: f32[128,256], index: 3, kind: input, shape index: {}]
  %s4 = inlined_call_operand.vmem [shape: f32[128,1], index: 4, kind: input, shape index: {}]
  %s5 = inlined_call_operand.vmem [shape: f32[1,128], index: 5, kind: input, shape index: {}]
  %s6 = inlined_call_operand.<no memory space> [shape: f32[1,1], index: 6, kind: input, shape index: {}]
  %s7 = inlined_call_operand.hbm [shape: f32[1,512], index: 7, kind: output, shape index: {}]
  %s8 = sld [smem:[#allocation0]]
  $region69: #{tpu_custom_call.1} parent=0
    _
  %s10 = ssub.s32 1, %s8
  %s11 = scalar_select 0, %s10, %s8
  %12 = sst [smem:[#allocation2]] %s6
  $region1: #{tpu_custom_call.1} parent=0
    #allocation3 [shape = 'u8[786432]{0}', space=vmem, size = 0xc0000, scoped, tag = 'input window, operand 0']
    #allocation4 [shape = 's32[2]{0}', space=sflag, size = 0x8, scoped, tag = 'scoped memory for tpu_custom_call.1']
    #allocation5 [shape = 's32[2]{0}', space=sflag, size = 0x8, scoped, tag = 'scoped memory for tpu_custom_call.1']
    #allocation6 [shape = 'u8[393216]{0}', space=vmem, size = 0x60000, scoped, tag = 'input window, operand 1, single buffered']
    #allocation7 [shape = 's32[1]{0}', space=sflag, size = 0x4, scoped, tag = 'scoped memory for tpu_custom_call.1']
    #allocation8 [shape = 'u8[2048]{0}', space=vmem, size = 0x800, scoped, tag = 'output window, operand 0']
    %13 = vsyncpa [#allocation4], 0
    %s14 = scalar_lea.sflag [#allocation4], 1
    %15 = vsyncpa %s14, 0
    %16 = vsyncpa [#allocation7], 0
    %17 = vsyncpa [#allocation5], 0
    %s18 = scalar_lea.sflag [#allocation5], 1
    %19 = vsyncpa %s18, 0
    loop: start=0, step=1, limit=4
    $region2: #{tpu_custom_call.1} parent=1 // loop_pre_header
      _
    $region3: #{tpu_custom_call.1} parent=1 // loop_header
      %s21 = sphi 0, %s25
      %p22 = scmp.ge.s32.totalorder %s21, 4
      %s31 = sphi 0, %s33
      %s34 = sphi 0, %s31
      %s35 = sphi 0, %s34
      %s51 = sphi 0, %s35
      %s55 = sphi 0, %s55
      %s57 = sphi 0, %s55
      %s58 = sphi 0, %s57
      %s72 = sphi 0, %s58
      %s76 = sphi 0, %s76
      %s78 = sphi 0, %s76
      %s79 = sphi 0, %s78
      %s93 = sphi 0, %s79
      %s97 = sphi 0, %s97
      %s99 = sphi 0, %s97
      %s100 = sphi 0, %s99
      %s114 = sphi 0, %s100
      %s118 = sphi 0, %s118
      %s120 = sphi 0, %s118
      %s121 = sphi 0, %s120
      %s135 = sphi 0, %s121
      %s139 = sphi 0, %s139
      %s141 = sphi 0, %s139
      %s142 = sphi 0, %s141
      %s156 = sphi 0, %s142
      %s160 = sphi 0, %s160
      %s162 = sphi 0, %s160
      %s163 = sphi 0, %s162
      %s177 = sphi 0, %s163
      %s183 = sphi 0, %s185
      %s186 = sphi 0, %s183
      %s187 = sphi 0, %s186
      %s203 = sphi 0, %s187
    $region4: #{tpu_custom_call.1} parent=1 // loop_header_branch
      %24 = sbr.rel (%p22) target = $region8
    $region5: #{tpu_custom_call.1} parent=1 // loop_body
      %s26 = ssub.s32 %s21, 1
      %s27 = ssub.s32 %s21, 2
      %s28 = sadd.s32 %s21, 1
      %s29 = ssub.s32 %s21, %s28
      %p30 = scmp.eq.s32.totalorder %s29, 0
      %s32 = sadd.s32 %s31, 1
      %s33 = scalar_select %p30, %s31, %s32
      %p36 = pneg %p30
      %p37 = scmp.eq.s32.totalorder %s21, 1
      %p38 = por %p36, %p37
      %p39 = scmp.ne.s32.totalorder %s31, %s34
      %p40 = scmp.eq.s32.totalorder %s21, 0
      %p41 = por %p39, %p40
      %p42 = scmp.ne.s32.totalorder %s31, %s34
      %p43 = scmp.eq.s32.totalorder %s26, 1
      %p44 = por %p42, %p43
      %p45 = scmp.ne.s32.totalorder %s34, %s35
      %p46 = scmp.eq.s32.totalorder %s26, 0
      %p47 = por %p45, %p46
      %p48 = scmp.ne.s32.totalorder %s34, %s35
      %p49 = scmp.eq.s32.totalorder %s27, 1
      %p50 = por %p48, %p49
      %p52 = scmp.ne.s32.totalorder %s35, %s51
      %p53 = scmp.eq.s32.totalorder %s27, 0
      %p54 = por %p52, %p53
      %s56 = sadd.s32 %s55, 1
      %p59 = scmp.eq.s32.totalorder %s21, 1
      %p60 = scmp.ne.s32.totalorder %s55, %s57
      %p61 = scmp.eq.s32.totalorder %s21, 0
      %p62 = por %p60, %p61
      %p63 = scmp.ne.s32.totalorder %s55, %s57
      %p64 = scmp.eq.s32.totalorder %s26, 1
      %p65 = por %p63, %p64
      %p66 = scmp.ne.s32.totalorder %s57, %s58
      %p67 = scmp.eq.s32.totalorder %s26, 0
      %p68 = por %p66, %p67
      %p69 = scmp.ne.s32.totalorder %s57, %s58
      %p70 = scmp.eq.s32.totalorder %s27, 1
      %p71 = por %p69, %p70
      %p73 = scmp.ne.s32.totalorder %s58, %s72
      %p74 = scmp.eq.s32.totalorder %s27, 0
      %p75 = por %p73, %p74
      %s77 = sadd.s32 %s76, 1
      %p80 = scmp.eq.s32.totalorder %s21, 1
      %p81 = scmp.ne.s32.totalorder %s76, %s78
      %p82 = scmp.eq.s32.totalorder %s21, 0
      %p83 = por %p81, %p82
      %p84 = scmp.ne.s32.totalorder %s76, %s78
      %p85 = scmp.eq.s32.totalorder %s26, 1
      %p86 = por %p84, %p85
      %p87 = scmp.ne.s32.totalorder %s78, %s79
      %p88 = scmp.eq.s32.totalorder %s26, 0
      %p89 = por %p87, %p88
      %p90 = scmp.ne.s32.totalorder %s78, %s79
      %p91 = scmp.eq.s32.totalorder %s27, 1
      %p92 = por %p90, %p91
      %p94 = scmp.ne.s32.totalorder %s79, %s93
      %p95 = scmp.eq.s32.totalorder %s27, 0
      %p96 = por %p94, %p95
      %s98 = sadd.s32 %s97, 1
      %p101 = scmp.eq.s32.totalorder %s21, 1
      %p102 = scmp.ne.s32.totalorder %s97, %s99
      %p103 = scmp.eq.s32.totalorder %s21, 0
      %p104 = por %p102, %p103
      %p105 = scmp.ne.s32.totalorder %s97, %s99
      %p106 = scmp.eq.s32.totalorder %s26, 1
      %p107 = por %p105, %p106
      %p108 = scmp.ne.s32.totalorder %s99, %s100
      %p109 = scmp.eq.s32.totalorder %s26, 0
      %p110 = por %p108, %p109
      %p111 = scmp.ne.s32.totalorder %s99, %s100
      %p112 = scmp.eq.s32.totalorder %s27, 1
      %p113 = por %p111, %p112
      %p115 = scmp.ne.s32.totalorder %s100, %s114
      %p116 = scmp.eq.s32.totalorder %s27, 0
      %p117 = por %p115, %p116
      %s119 = sadd.s32 %s118, 1
      %p122 = scmp.eq.s32.totalorder %s21, 1
      %p123 = scmp.ne.s32.totalorder %s118, %s120
      %p124 = scmp.eq.s32.totalorder %s21, 0
      %p125 = por %p123, %p124
      %p126 = scmp.ne.s32.totalorder %s118, %s120
      %p127 = scmp.eq.s32.totalorder %s26, 1
      %p128 = por %p126, %p127
      %p129 = scmp.ne.s32.totalorder %s120, %s121
      %p130 = scmp.eq.s32.totalorder %s26, 0
      %p131 = por %p129, %p130
      %p132 = scmp.ne.s32.totalorder %s120, %s121
      %p133 = scmp.eq.s32.totalorder %s27, 1
      %p134 = por %p132, %p133
      %p136 = scmp.ne.s32.totalorder %s121, %s135
      %p137 = scmp.eq.s32.totalorder %s27, 0
      %p138 = por %p136, %p137
      %s140 = sadd.s32 %s139, 1
      %p143 = scmp.eq.s32.totalorder %s21, 1
      %p144 = scmp.ne.s32.totalorder %s139, %s141
      %p145 = scmp.eq.s32.totalorder %s21, 0
      %p146 = por %p144, %p145
      %p147 = scmp.ne.s32.totalorder %s139, %s141
      %p148 = scmp.eq.s32.totalorder %s26, 1
      %p149 = por %p147, %p148
      %p150 = scmp.ne.s32.totalorder %s141, %s142
      %p151 = scmp.eq.s32.totalorder %s26, 0
      %p152 = por %p150, %p151
      %p153 = scmp.ne.s32.totalorder %s141, %s142
      %p154 = scmp.eq.s32.totalorder %s27, 1
      %p155 = por %p153, %p154
      %p157 = scmp.ne.s32.totalorder %s142, %s156
      %p158 = scmp.eq.s32.totalorder %s27, 0
      %p159 = por %p157, %p158
      %s161 = sadd.s32 %s160, 1
      %p164 = scmp.eq.s32.totalorder %s21, 1
      %p165 = scmp.ne.s32.totalorder %s160, %s162
      %p166 = scmp.eq.s32.totalorder %s21, 0
      %p167 = por %p165, %p166
      %p168 = scmp.ne.s32.totalorder %s160, %s162
      %p169 = scmp.eq.s32.totalorder %s26, 1
      %p170 = por %p168, %p169
      %p171 = scmp.ne.s32.totalorder %s162, %s163
      %p172 = scmp.eq.s32.totalorder %s26, 0
      %p173 = por %p171, %p172
      %p174 = scmp.ne.s32.totalorder %s162, %s163
      %p175 = scmp.eq.s32.totalorder %s27, 1
      %p176 = por %p174, %p175
      %p178 = scmp.ne.s32.totalorder %s163, %s177
      %p179 = scmp.eq.s32.totalorder %s27, 0
      %p180 = por %p178, %p179
      %s181 = ssub.s32 %s21, %s28
      %p182 = scmp.eq.s32.totalorder %s181, 0
      %s184 = sadd.s32 %s183, 1
      %s185 = scalar_select %p182, %s183, %s184
      %p188 = pneg %p182
      %p189 = scmp.eq.s32.totalorder %s21, 1
      %p190 = por %p188, %p189
      %p191 = scmp.ne.s32.totalorder %s183, %s186
      %p192 = scmp.eq.s32.totalorder %s21, 0
      %p193 = por %p191, %p192
      %p194 = scmp.ne.s32.totalorder %s183, %s186
      %p195 = scmp.eq.s32.totalorder %s26, 1
      %p196 = por %p194, %p195
      %p197 = scmp.ne.s32.totalorder %s186, %s187
      %p198 = scmp.eq.s32.totalorder %s26, 0
      %p199 = por %p197, %p198
      %p200 = scmp.ne.s32.totalorder %s186, %s187
      %p201 = scmp.eq.s32.totalorder %s27, 1
      %p202 = por %p200, %p201
      %p204 = scmp.ne.s32.totalorder %s187, %s203
      %p205 = scmp.eq.s32.totalorder %s27, 0
      %p206 = por %p204, %p205
      %p207 = scmp.le.s32.totalorder 1, %s21
      %p208 = scmp.lt.s32.totalorder %s21, 3
      %p209 = pnand %p207, %p208
      %p210 = pneg %p209
      // Predicated region
      $region9: #{tpu_custom_call.1} parent=5 // pred_check
        _
      $region10: #{tpu_custom_call.1} parent=5 // pred_check_branch
        %212 = sbr.rel (%p209) target = $region12
      $region11: #{tpu_custom_call.1} parent=5 // pred_region
        %s213 = ssub.s32 %s21, 1
        // Predicated region
        $region13: #{tpu_custom_call.1} parent=11 // pred_check
          %p214 = pneg %p68
        $region14: #{tpu_custom_call.1} parent=11 // pred_check_branch
          %216 = sbr.rel (%p214) target = $region16
        $region15: #{tpu_custom_call.1} parent=11 // pred_region
          %218 = vsyncadd [#allocation7], 0
          %s219 = sshll.u32 %s1, 4
          %s220 = int_to_ptr.hbm [resolvable:$true] %s219
          %s221 = sshll.u32 [#allocation6], 4
          %s222 = int_to_ptr.vmem [resolvable:$true] %s221
          %227 = dma.hbm_to_vmem [thread:$0]  %s220, 12288, %s222, [#allocation7], 384, 384, 24
        $region16: #{tpu_custom_call.1} parent=11 // pred_fallthru
          _
        // Predicated region
        $region17: #{tpu_custom_call.1} parent=11 // pred_check
          %p228 = pneg %p89
        $region18: #{tpu_custom_call.1} parent=11 // pred_check_branch
          %230 = sbr.rel (%p228) target = $region20
        $region19: #{tpu_custom_call.1} parent=11 // pred_region
          _
        $region20: #{tpu_custom_call.1} parent=11 // pred_fallthru
          _
        // Predicated region
        $region21: #{tpu_custom_call.1} parent=11 // pred_check
          %p231 = pneg %p110
        $region22: #{tpu_custom_call.1} parent=11 // pred_check_branch
          %233 = sbr.rel (%p231) target = $region24
        $region23: #{tpu_custom_call.1} parent=11 // pred_region
          _
        $region24: #{tpu_custom_call.1} parent=11 // pred_fallthru
          _
        // Predicated region
        $region25: #{tpu_custom_call.1} parent=11 // pred_check
          %p234 = pneg %p131
        $region26: #{tpu_custom_call.1} parent=11 // pred_check_branch
          %236 = sbr.rel (%p234) target = $region28
        $region27: #{tpu_custom_call.1} parent=11 // pred_region
          _
        $region28: #{tpu_custom_call.1} parent=11 // pred_fallthru
          _
        // Predicated region
        $region29: #{tpu_custom_call.1} parent=11 // pred_check
          %p237 = pneg %p152
        $region30: #{tpu_custom_call.1} parent=11 // pred_check_branch
          %239 = sbr.rel (%p237) target = $region32
        $region31: #{tpu_custom_call.1} parent=11 // pred_region
          _
        $region32: #{tpu_custom_call.1} parent=11 // pred_fallthru
          _
        // Predicated region
        $region33: #{tpu_custom_call.1} parent=11 // pred_check
          %p240 = pneg %p173
        $region34: #{tpu_custom_call.1} parent=11 // pred_check_branch
          %242 = sbr.rel (%p240) target = $region36
        $region35: #{tpu_custom_call.1} parent=11 // pred_region
          _
        $region36: #{tpu_custom_call.1} parent=11 // pred_fallthru
          _
      $region12: #{tpu_custom_call.1} parent=5 // pred_fallthru
        _
      %p243 = scmp.lt.s32.totalorder %s21, 2
      // Predicated region
      $region37: #{tpu_custom_call.1} parent=5 // pred_check
        %p244 = pneg %p243
      $region38: #{tpu_custom_call.1} parent=5 // pred_check_branch
        %246 = sbr.rel (%p244) target = $region40
      $region39: #{tpu_custom_call.1} parent=5 // pred_region
        // Predicated region
        $region41: #{tpu_custom_call.1} parent=39 // pred_check
          %p247 = pneg %p41
        $region42: #{tpu_custom_call.1} parent=39 // pred_check_branch
          %249 = sbr.rel (%p247) target = $region44
        $region43: #{tpu_custom_call.1} parent=39 // pred_region
          %s250 = sand.u32 %s31, 1
          %s251 = scalar_lea.sflag [#allocation4], %s250
          %s252 = sand.u32 %s31, 1
          %s253 = smul.addr %s252, 768
          %s254 = scalar_lea.vmem [#allocation3], %s253
          %s255 = smul.u32 2, %s21
          %257 = vsyncadd %s251, 0
          %s258 = smul.addr %s255, 8
          %s259 = scalar_lea.hbm %s0, %s258
          %s260 = sshll.u32 %s259, 4
          %s261 = int_to_ptr.hbm [resolvable:$true] %s260
          %s262 = sshll.u32 %s254, 4
          %s263 = int_to_ptr.vmem [resolvable:$true] %s262
          %268 = dma.hbm_to_vmem [thread:$0]  %s261, 12288, %s263, %s251, 512, 256, 16
        $region44: #{tpu_custom_call.1} parent=39 // pred_fallthru
          _
      $region40: #{tpu_custom_call.1} parent=5 // pred_fallthru
        _
      %p269 = scmp.le.s32.totalorder 1, %s21
      %p270 = scmp.lt.s32.totalorder %s21, 3
      %p271 = pnand %p269, %p270
      %p272 = pneg %p271
      // Predicated region
      $region45: #{tpu_custom_call.1} parent=5 // pred_check
        _
      $region46: #{tpu_custom_call.1} parent=5 // pred_check_branch
        %274 = sbr.rel (%p271) target = $region48
      $region47: #{tpu_custom_call.1} parent=5 // pred_region
        %s275 = ssub.s32 %s21, 1
        %s276 = sand.u32 %s34, 1
        %s277 = scalar_lea.sflag [#allocation4], %s276
        %s278 = sand.u32 %s34, 1
        %s279 = smul.addr %s278, 768
        %s280 = scalar_lea.vmem [#allocation3], %s279
        // Predicated region
        $region49: #{tpu_custom_call.1} parent=47 // pred_check
          %p281 = pneg %p47
        $region50: #{tpu_custom_call.1} parent=47 // pred_check_branch
          %283 = sbr.rel (%p281) target = $region52
        $region51: #{tpu_custom_call.1} parent=47 // pred_region
          %285 = dma.done %s277, 12288
        $region52: #{tpu_custom_call.1} parent=47 // pred_fallthru
          _
        // Predicated region
        $region53: #{tpu_custom_call.1} parent=47 // pred_check
          %p286 = pneg %p68
        $region54: #{tpu_custom_call.1} parent=47 // pred_check_branch
          %288 = sbr.rel (%p286) target = $region56
        $region55: #{tpu_custom_call.1} parent=47 // pred_region
          %290 = dma.done [#allocation7], 12288
        $region56: #{tpu_custom_call.1} parent=47 // pred_fallthru
          _
        %s291 = sand.u32 %s34, 1
        %s292 = scalar_lea.sflag [#allocation4], %s291
        %s293 = sand.u32 %s34, 1
        %s294 = smul.addr %s293, 768
        %s295 = scalar_lea.vmem [#allocation3], %s294
        %p296 = pneg %p47
        %p297 = pneg %p44
        %p298 = pneg %p68
        %p299 = pneg %p65
        %p300 = pneg %p89
        %p301 = pneg %p86
        %p302 = pneg %p110
        %p303 = pneg %p107
        %p304 = pneg %p131
        %p305 = pneg %p128
        %p306 = pneg %p152
        %p307 = pneg %p149
        %p308 = pneg %p173
        %p309 = pneg %p170
        %p310 = pneg %p199
        %p311 = pneg %p196
        %s312 = sand.u32 %s186, 1
        %s313 = scalar_lea.sflag [#allocation5], %s312
        %s314 = sand.u32 %s186, 1
        %s315 = smul.addr %s314, 2
        %s316 = scalar_lea.vmem [#allocation8], %s315
        %s317 = smul.u32 2, %s26
        %s318 = smul.u32 2, %s26
        %v319 = vld [vmem:[%s280] sm:$0xff]
        %v320 = vld [vmem:[%s280 + $0x8] sm:$0xff]
        %v321 = vld [vmem:[%s280 + $0x10] sm:$0xff]
        %v322 = vld [vmem:[%s280 + $0x18] sm:$0xff]
        %v323 = vld [vmem:[%s280 + $0x20] sm:$0xff]
        %v324 = vld [vmem:[%s280 + $0x28] sm:$0xff]
        %v325 = vld [vmem:[%s280 + $0x30] sm:$0xff]
        %v326 = vld [vmem:[%s280 + $0x38] sm:$0xff]
        %v327 = vld [vmem:[%s280 + $0x40] sm:$0xff]
        %v328 = vld [vmem:[%s280 + $0x48] sm:$0xff]
        %v329 = vld [vmem:[%s280 + $0x50] sm:$0xff]
        %v330 = vld [vmem:[%s280 + $0x58] sm:$0xff]
        %v331 = vld [vmem:[%s280 + $0x60] sm:$0xff]
        %v332 = vld [vmem:[%s280 + $0x68] sm:$0xff]
        %v333 = vld [vmem:[%s280 + $0x70] sm:$0xff]
        %v334 = vld [vmem:[%s280 + $0x78] sm:$0xff]
        %v335 = vld [vmem:[%s280 + $0x80] sm:$0xff]
        %v336 = vld [vmem:[%s280 + $0x88] sm:$0xff]
        %v337 = vld [vmem:[%s280 + $0x90] sm:$0xff]
        %v338 = vld [vmem:[%s280 + $0x98] sm:$0xff]
        %v339 = vld [vmem:[%s280 + $0xa0] sm:$0xff]
        %v340 = vld [vmem:[%s280 + $0xa8] sm:$0xff]
        %v341 = vld [vmem:[%s280 + $0xb0] sm:$0xff]
        %v342 = vld [vmem:[%s280 + $0xb8] sm:$0xff]
        %v343 = vld [vmem:[%s280 + $0xc0] sm:$0xff]
        %v344 = vld [vmem:[%s280 + $0xc8] sm:$0xff]
        %v345 = vld [vmem:[%s280 + $0xd0] sm:$0xff]
        %v346 = vld [vmem:[%s280 + $0xd8] sm:$0xff]
        %v347 = vld [vmem:[%s280 + $0xe0] sm:$0xff]
        %v348 = vld [vmem:[%s280 + $0xe8] sm:$0xff]
        %v349 = vld [vmem:[%s280 + $0xf0] sm:$0xff]
        %v350 = vld [vmem:[%s280 + $0xf8] sm:$0xff]
        %v351 = vld [vmem:[%s280 + $0x100] sm:$0xff]
        %v352 = vld [vmem:[%s280 + $0x108] sm:$0xff]
        %v353 = vld [vmem:[%s280 + $0x110] sm:$0xff]
        %v354 = vld [vmem:[%s280 + $0x118] sm:$0xff]
        %v355 = vld [vmem:[%s280 + $0x120] sm:$0xff]
        %v356 = vld [vmem:[%s280 + $0x128] sm:$0xff]
        %v357 = vld [vmem:[%s280 + $0x130] sm:$0xff]
        %v358 = vld [vmem:[%s280 + $0x138] sm:$0xff]
        %v359 = vld [vmem:[%s280 + $0x140] sm:$0xff]
        %v360 = vld [vmem:[%s280 + $0x148] sm:$0xff]
        %v361 = vld [vmem:[%s280 + $0x150] sm:$0xff]
        %v362 = vld [vmem:[%s280 + $0x158] sm:$0xff]
        %v363 = vld [vmem:[%s280 + $0x160] sm:$0xff]
        %v364 = vld [vmem:[%s280 + $0x168] sm:$0xff]
        %v365 = vld [vmem:[%s280 + $0x170] sm:$0xff]
        %v366 = vld [vmem:[%s280 + $0x178] sm:$0xff]
        %v367 = vld [vmem:[%s280 + $0x180] sm:$0xff]
        %v368 = vld [vmem:[%s280 + $0x188] sm:$0xff]
        %v369 = vld [vmem:[%s280 + $0x190] sm:$0xff]
        %v370 = vld [vmem:[%s280 + $0x198] sm:$0xff]
        %v371 = vld [vmem:[%s280 + $0x1a0] sm:$0xff]
        %v372 = vld [vmem:[%s280 + $0x1a8] sm:$0xff]
        %v373 = vld [vmem:[%s280 + $0x1b0] sm:$0xff]
        %v374 = vld [vmem:[%s280 + $0x1b8] sm:$0xff]
        %v375 = vld [vmem:[%s280 + $0x1c0] sm:$0xff]
        %v376 = vld [vmem:[%s280 + $0x1c8] sm:$0xff]
        %v377 = vld [vmem:[%s280 + $0x1d0] sm:$0xff]
        %v378 = vld [vmem:[%s280 + $0x1d8] sm:$0xff]
        %v379 = vld [vmem:[%s280 + $0x1e0] sm:$0xff]
        %v380 = vld [vmem:[%s280 + $0x1e8] sm:$0xff]
        %v381 = vld [vmem:[%s280 + $0x1f0] sm:$0xff]
        %v382 = vld [vmem:[%s280 + $0x1f8] sm:$0xff]
        %v383 = vld [vmem:[%s280 + $0x200] sm:$0xff]
        %v384 = vld [vmem:[%s280 + $0x208] sm:$0xff]
        %v385 = vld [vmem:[%s280 + $0x210] sm:$0xff]
        %v386 = vld [vmem:[%s280 + $0x218] sm:$0xff]
        %v387 = vld [vmem:[%s280 + $0x220] sm:$0xff]
        %v388 = vld [vmem:[%s280 + $0x228] sm:$0xff]
        %v389 = vld [vmem:[%s280 + $0x230] sm:$0xff]
        %v390 = vld [vmem:[%s280 + $0x238] sm:$0xff]
        %v391 = vld [vmem:[%s280 + $0x240] sm:$0xff]
        %v392 = vld [vmem:[%s280 + $0x248] sm:$0xff]
        %v393 = vld [vmem:[%s280 + $0x250] sm:$0xff]
        %v394 = vld [vmem:[%s280 + $0x258] sm:$0xff]
        %v395 = vld [vmem:[%s280 + $0x260] sm:$0xff]
        %v396 = vld [vmem:[%s280 + $0x268] sm:$0xff]
        %v397 = vld [vmem:[%s280 + $0x270] sm:$0xff]
        %v398 = vld [vmem:[%s280 + $0x278] sm:$0xff]
        %v399 = vld [vmem:[%s280 + $0x280] sm:$0xff]
        %v400 = vld [vmem:[%s280 + $0x288] sm:$0xff]
        %v401 = vld [vmem:[%s280 + $0x290] sm:$0xff]
        %v402 = vld [vmem:[%s280 + $0x298] sm:$0xff]
        %v403 = vld [vmem:[%s280 + $0x2a0] sm:$0xff]
        %v404 = vld [vmem:[%s280 + $0x2a8] sm:$0xff]
        %v405 = vld [vmem:[%s280 + $0x2b0] sm:$0xff]
        %v406 = vld [vmem:[%s280 + $0x2b8] sm:$0xff]
        %v407 = vld [vmem:[%s280 + $0x2c0] sm:$0xff]
        %v408 = vld [vmem:[%s280 + $0x2c8] sm:$0xff]
        %v409 = vld [vmem:[%s280 + $0x2d0] sm:$0xff]
        %v410 = vld [vmem:[%s280 + $0x2d8] sm:$0xff]
        %v411 = vld [vmem:[%s280 + $0x2e0] sm:$0xff]
        %v412 = vld [vmem:[%s280 + $0x2e8] sm:$0xff]
        %v413 = vld [vmem:[%s280 + $0x2f0] sm:$0xff]
        %v414 = vld [vmem:[%s280 + $0x2f8] sm:$0xff]
        %v415 = vld [vmem:[#allocation6] sm:$0xff]
        %v416 = vld [vmem:[#allocation6 + $0x8] sm:$0xff]
        %v417 = vld [vmem:[#allocation6 + $0x10] sm:$0xff]
        %v418 = vld [vmem:[#allocation6 + $0x18] sm:$0xff]
        %v419 = vld [vmem:[#allocation6 + $0x20] sm:$0xff]
        %v420 = vld [vmem:[#allocation6 + $0x28] sm:$0xff]
        %v421 = vld [vmem:[#allocation6 + $0x30] sm:$0xff]
        %v422 = vld [vmem:[#allocation6 + $0x38] sm:$0xff]
        %v423 = vld [vmem:[#allocation6 + $0x40] sm:$0xff]
        %v424 = vld [vmem:[#allocation6 + $0x48] sm:$0xff]
        %v425 = vld [vmem:[#allocation6 + $0x50] sm:$0xff]
        %v426 = vld [vmem:[#allocation6 + $0x58] sm:$0xff]
        %v427 = vld [vmem:[#allocation6 + $0x60] sm:$0xff]
        %v428 = vld [vmem:[#allocation6 + $0x68] sm:$0xff]
        %v429 = vld [vmem:[#allocation6 + $0x70] sm:$0xff]
        %v430 = vld [vmem:[#allocation6 + $0x78] sm:$0xff]
        %v431 = vld [vmem:[#allocation6 + $0x80] sm:$0xff]
        %v432 = vld [vmem:[#allocation6 + $0x88] sm:$0xff]
        %v433 = vld [vmem:[#allocation6 + $0x90] sm:$0xff]
        %v434 = vld [vmem:[#allocation6 + $0x98] sm:$0xff]
        %v435 = vld [vmem:[#allocation6 + $0xa0] sm:$0xff]
        %v436 = vld [vmem:[#allocation6 + $0xa8] sm:$0xff]
        %v437 = vld [vmem:[#allocation6 + $0xb0] sm:$0xff]
        %v438 = vld [vmem:[#allocation6 + $0xb8] sm:$0xff]
        %v439 = vld [vmem:[#allocation6 + $0xc0] sm:$0xff]
        %v440 = vld [vmem:[#allocation6 + $0xc8] sm:$0xff]
        %v441 = vld [vmem:[#allocation6 + $0xd0] sm:$0xff]
        %v442 = vld [vmem:[#allocation6 + $0xd8] sm:$0xff]
        %v443 = vld [vmem:[#allocation6 + $0xe0] sm:$0xff]
        %v444 = vld [vmem:[#allocation6 + $0xe8] sm:$0xff]
        %v445 = vld [vmem:[#allocation6 + $0xf0] sm:$0xff]
        %v446 = vld [vmem:[#allocation6 + $0xf8] sm:$0xff]
        %v447 = vld [vmem:[#allocation6 + $0x100] sm:$0xff]
        %v448 = vld [vmem:[#allocation6 + $0x108] sm:$0xff]
        %v449 = vld [vmem:[#allocation6 + $0x110] sm:$0xff]
        %v450 = vld [vmem:[#allocation6 + $0x118] sm:$0xff]
        %v451 = vld [vmem:[#allocation6 + $0x120] sm:$0xff]
        %v452 = vld [vmem:[#allocation6 + $0x128] sm:$0xff]
        %v453 = vld [vmem:[#allocation6 + $0x130] sm:$0xff]
        %v454 = vld [vmem:[#allocation6 + $0x138] sm:$0xff]
        %v455 = vld [vmem:[#allocation6 + $0x140] sm:$0xff]
        %v456 = vld [vmem:[#allocation6 + $0x148] sm:$0xff]
        %v457 = vld [vmem:[#allocation6 + $0x150] sm:$0xff]
        %v458 = vld [vmem:[#allocation6 + $0x158] sm:$0xff]
        %v459 = vld [vmem:[#allocation6 + $0x160] sm:$0xff]
        %v460 = vld [vmem:[#allocation6 + $0x168] sm:$0xff]
        %v461 = vld [vmem:[#allocation6 + $0x170] sm:$0xff]
        %v462 = vld [vmem:[#allocation6 + $0x178] sm:$0xff]
        %v463 = vld [vmem:[#allocation6 + $0x180] sm:$0xff]
        %v464 = vld [vmem:[#allocation6 + $0x188] sm:$0xff]
        %v465 = vld [vmem:[#allocation6 + $0x190] sm:$0xff]
        %v466 = vld [vmem:[#allocation6 + $0x198] sm:$0xff]
        %v467 = vld [vmem:[#allocation6 + $0x1a0] sm:$0xff]
        %v468 = vld [vmem:[#allocation6 + $0x1a8] sm:$0xff]
        %v469 = vld [vmem:[#allocation6 + $0x1b0] sm:$0xff]
        %v470 = vld [vmem:[#allocation6 + $0x1b8] sm:$0xff]
        %v471 = vld [vmem:[#allocation6 + $0x1c0] sm:$0xff]
        %v472 = vld [vmem:[#allocation6 + $0x1c8] sm:$0xff]
        %v473 = vld [vmem:[#allocation6 + $0x1d0] sm:$0xff]
        %v474 = vld [vmem:[#allocation6 + $0x1d8] sm:$0xff]
        %v475 = vld [vmem:[#allocation6 + $0x1e0] sm:$0xff]
        %v476 = vld [vmem:[#allocation6 + $0x1e8] sm:$0xff]
        %v477 = vld [vmem:[#allocation6 + $0x1f0] sm:$0xff]
        %v478 = vld [vmem:[#allocation6 + $0x1f8] sm:$0xff]
        %v479 = vld [vmem:[#allocation6 + $0x200] sm:$0xff]
        %v480 = vld [vmem:[#allocation6 + $0x208] sm:$0xff]
        %v481 = vld [vmem:[#allocation6 + $0x210] sm:$0xff]
        %v482 = vld [vmem:[#allocation6 + $0x218] sm:$0xff]
        %v483 = vld [vmem:[#allocation6 + $0x220] sm:$0xff]
        %v484 = vld [vmem:[#allocation6 + $0x228] sm:$0xff]
        %v485 = vld [vmem:[#allocation6 + $0x230] sm:$0xff]
        %v486 = vld [vmem:[#allocation6 + $0x238] sm:$0xff]
        %v487 = vld [vmem:[#allocation6 + $0x240] sm:$0xff]
        %v488 = vld [vmem:[#allocation6 + $0x248] sm:$0xff]
        %v489 = vld [vmem:[#allocation6 + $0x250] sm:$0xff]
        %v490 = vld [vmem:[#allocation6 + $0x258] sm:$0xff]
        %v491 = vld [vmem:[#allocation6 + $0x260] sm:$0xff]
        %v492 = vld [vmem:[#allocation6 + $0x268] sm:$0xff]
        %v493 = vld [vmem:[#allocation6 + $0x270] sm:$0xff]
        %v494 = vld [vmem:[#allocation6 + $0x278] sm:$0xff]
        %v495 = vld [vmem:[#allocation6 + $0x280] sm:$0xff]
        %v496 = vld [vmem:[#allocation6 + $0x288] sm:$0xff]
        %v497 = vld [vmem:[#allocation6 + $0x290] sm:$0xff]
        %v498 = vld [vmem:[#allocation6 + $0x298] sm:$0xff]
        %v499 = vld [vmem:[#allocation6 + $0x2a0] sm:$0xff]
        %v500 = vld [vmem:[#allocation6 + $0x2a8] sm:$0xff]
        %v501 = vld [vmem:[#allocation6 + $0x2b0] sm:$0xff]
        %v502 = vld [vmem:[#allocation6 + $0x2b8] sm:$0xff]
        %v503 = vld [vmem:[#allocation6 + $0x2c0] sm:$0xff]
        %v504 = vld [vmem:[#allocation6 + $0x2c8] sm:$0xff]
        %v505 = vld [vmem:[#allocation6 + $0x2d0] sm:$0xff]
        %v506 = vld [vmem:[#allocation6 + $0x2d8] sm:$0xff]
        %v507 = vld [vmem:[#allocation6 + $0x2e0] sm:$0xff]
        %v508 = vld [vmem:[#allocation6 + $0x2e8] sm:$0xff]
        %v509 = vld [vmem:[#allocation6 + $0x2f0] sm:$0xff]
        %v510 = vld [vmem:[#allocation6 + $0x2f8] sm:$0xff]
        %v511 = vld [vmem:[%s2] sm:$0xff]
        %v512 = vld [vmem:[%s2 + $0x8] sm:$0xff]
        %v513 = vld [vmem:[%s2 + $0x10] sm:$0xff]
        %v514 = vld [vmem:[%s2 + $0x18] sm:$0xff]
        %v515 = vld [vmem:[%s2 + $0x20] sm:$0xff]
        %v516 = vld [vmem:[%s2 + $0x28] sm:$0xff]
        %v517 = vld [vmem:[%s2 + $0x30] sm:$0xff]
        %v518 = vld [vmem:[%s2 + $0x38] sm:$0xff]
        %v519 = vld [vmem:[%s2 + $0x40] sm:$0xff]
        %v520 = vld [vmem:[%s2 + $0x48] sm:$0xff]
        %v521 = vld [vmem:[%s2 + $0x50] sm:$0xff]
        %v522 = vld [vmem:[%s2 + $0x58] sm:$0xff]
        %v523 = vld [vmem:[%s2 + $0x60] sm:$0xff]
        %v524 = vld [vmem:[%s2 + $0x68] sm:$0xff]
        %v525 = vld [vmem:[%s2 + $0x70] sm:$0xff]
        %v526 = vld [vmem:[%s2 + $0x78] sm:$0xff]
        %v527 = vld [vmem:[%s2 + $0x80] sm:$0xff]
        %v528 = vld [vmem:[%s2 + $0x88] sm:$0xff]
        %v529 = vld [vmem:[%s2 + $0x90] sm:$0xff]
        %v530 = vld [vmem:[%s2 + $0x98] sm:$0xff]
        %v531 = vld [vmem:[%s2 + $0xa0] sm:$0xff]
        %v532 = vld [vmem:[%s2 + $0xa8] sm:$0xff]
        %v533 = vld [vmem:[%s2 + $0xb0] sm:$0xff]
        %v534 = vld [vmem:[%s2 + $0xb8] sm:$0xff]
        %v535 = vld [vmem:[%s2 + $0xc0] sm:$0xff]
        %v536 = vld [vmem:[%s2 + $0xc8] sm:$0xff]
        %v537 = vld [vmem:[%s2 + $0xd0] sm:$0xff]
        %v538 = vld [vmem:[%s2 + $0xd8] sm:$0xff]
        %v539 = vld [vmem:[%s2 + $0xe0] sm:$0xff]
        %v540 = vld [vmem:[%s2 + $0xe8] sm:$0xff]
        %v541 = vld [vmem:[%s2 + $0xf0] sm:$0xff]
        %v542 = vld [vmem:[%s2 + $0xf8] sm:$0xff]
        %544 = vset.pattern.permute.xlu0 0
        %545 = vperm.xlu0 %544, %v511
        %v546 = vpop.permute.xlu0 %545
        %549 = vset.pattern.permute.xlu0 0
        %550 = vperm.xlu0 %549, %v512
        %v551 = vpop.permute.xlu0 %550
        %554 = vset.pattern.permute.xlu0 0
        %555 = vperm.xlu0 %554, %v513
        %v556 = vpop.permute.xlu0 %555
        %559 = vset.pattern.permute.xlu0 0
        %560 = vperm.xlu0 %559, %v514
        %v561 = vpop.permute.xlu0 %560
        %564 = vset.pattern.permute.xlu0 0
        %565 = vperm.xlu0 %564, %v515
        %v566 = vpop.permute.xlu0 %565
        %569 = vset.pattern.permute.xlu0 0
        %570 = vperm.xlu0 %569, %v516
        %v571 = vpop.permute.xlu0 %570
        %574 = vset.pattern.permute.xlu0 0
        %575 = vperm.xlu0 %574, %v517
        %v576 = vpop.permute.xlu0 %575
        %579 = vset.pattern.permute.xlu0 0
        %580 = vperm.xlu0 %579, %v518
        %v581 = vpop.permute.xlu0 %580
        %584 = vset.pattern.permute.xlu0 0
        %585 = vperm.xlu0 %584, %v519
        %v586 = vpop.permute.xlu0 %585
        %589 = vset.pattern.permute.xlu0 0
        %590 = vperm.xlu0 %589, %v520
        %v591 = vpop.permute.xlu0 %590
        %594 = vset.pattern.permute.xlu0 0
        %595 = vperm.xlu0 %594, %v521
        %v596 = vpop.permute.xlu0 %595
        %599 = vset.pattern.permute.xlu0 0
        %600 = vperm.xlu0 %599, %v522
        %v601 = vpop.permute.xlu0 %600
        %604 = vset.pattern.permute.xlu0 0
        %605 = vperm.xlu0 %604, %v523
        %v606 = vpop.permute.xlu0 %605
        %609 = vset.pattern.permute.xlu0 0
        %610 = vperm.xlu0 %609, %v524
        %v611 = vpop.permute.xlu0 %610
        %614 = vset.pattern.permute.xlu0 0
        %615 = vperm.xlu0 %614, %v525
        %v616 = vpop.permute.xlu0 %615
        %619 = vset.pattern.permute.xlu0 0
        %620 = vperm.xlu0 %619, %v526
        %v621 = vpop.permute.xlu0 %620
        %624 = vset.pattern.permute.xlu0 0
        %625 = vperm.xlu0 %624, %v527
        %v626 = vpop.permute.xlu0 %625
        %629 = vset.pattern.permute.xlu0 0
        %630 = vperm.xlu0 %629, %v528
        %v631 = vpop.permute.xlu0 %630
        %634 = vset.pattern.permute.xlu0 0
        %635 = vperm.xlu0 %634, %v529
        %v636 = vpop.permute.xlu0 %635
        %639 = vset.pattern.permute.xlu0 0
        %640 = vperm.xlu0 %639, %v530
        %v641 = vpop.permute.xlu0 %640
        %644 = vset.pattern.permute.xlu0 0
        %645 = vperm.xlu0 %644, %v531
        %v646 = vpop.permute.xlu0 %645
        %649 = vset.pattern.permute.xlu0 0
        %650 = vperm.xlu0 %649, %v532
        %v651 = vpop.permute.xlu0 %650
        %654 = vset.pattern.permute.xlu0 0
        %655 = vperm.xlu0 %654, %v533
        %v656 = vpop.permute.xlu0 %655
        %659 = vset.pattern.permute.xlu0 0
        %660 = vperm.xlu0 %659, %v534
        %v661 = vpop.permute.xlu0 %660
        %664 = vset.pattern.permute.xlu0 0
        %665 = vperm.xlu0 %664, %v535
        %v666 = vpop.permute.xlu0 %665
        %669 = vset.pattern.permute.xlu0 0
        %670 = vperm.xlu0 %669, %v536
        %v671 = vpop.permute.xlu0 %670
        %674 = vset.pattern.permute.xlu0 0
        %675 = vperm.xlu0 %674, %v537
        %v676 = vpop.permute.xlu0 %675
        %679 = vset.pattern.permute.xlu0 0
        %680 = vperm.xlu0 %679, %v538
        %v681 = vpop.permute.xlu0 %680
        %684 = vset.pattern.permute.xlu0 0
        %685 = vperm.xlu0 %684, %v539
        %v686 = vpop.permute.xlu0 %685
        %689 = vset.pattern.permute.xlu0 0
        %690 = vperm.xlu0 %689, %v540
        %v691 = vpop.permute.xlu0 %690
        %694 = vset.pattern.permute.xlu0 0
        %695 = vperm.xlu0 %694, %v541
        %v696 = vpop.permute.xlu0 %695
        %699 = vset.pattern.permute.xlu0 0
        %700 = vperm.xlu0 %699, %v542
        %v701 = vpop.permute.xlu0 %700
        %703 = vmatpush.msra.mxu0 %v349
        %704 = vmatpush.msra.mxu0 %v347
        %705 = vmatpush.msra.mxu0 %v345
        %706 = vmatpush.msra.mxu0 %v343
        %707 = vmatpush.msra.mxu0 %v341
        %708 = vmatpush.msra.mxu0 %v339
        %709 = vmatpush.msra.mxu0 %v337
        %710 = vmatpush.msra.mxu0 %v335
        %711 = vmatpush.msra.mxu0 %v333
        %712 = vmatpush.msra.mxu0 %v331
        %713 = vmatpush.msra.mxu0 %v329
        %714 = vmatpush.msra.mxu0 %v327
        %715 = vmatpush.msra.mxu0 %v325
        %716 = vmatpush.msra.mxu0 %v323
        %717 = vmatpush.msra.mxu0 %v321
        %718 = vmatpush.msra.mxu0 %v319
        %719 = vmatmul.f32.gmra.mxu0 %v415
        %v720 = vpop.f32.mrf.mxu0
        %v721 = vadd.f32 %v546, %v720
        %722 = vmatmul.f32.gmra.mxu0 %v418
        %v723 = vpop.f32.mrf.mxu0
        %v724 = vadd.f32 %v551, %v723
        %725 = vmatmul.f32.gmra.mxu0 %v421
        %v726 = vpop.f32.mrf.mxu0
        %v727 = vadd.f32 %v556, %v726
        %728 = vmatmul.f32.gmra.mxu0 %v424
        %v729 = vpop.f32.mrf.mxu0
        %v730 = vadd.f32 %v561, %v729
        %731 = vmatmul.f32.gmra.mxu0 %v427
        %v732 = vpop.f32.mrf.mxu0
        %v733 = vadd.f32 %v566, %v732
        %734 = vmatmul.f32.gmra.mxu0 %v430
        %v735 = vpop.f32.mrf.mxu0
        %v736 = vadd.f32 %v571, %v735
        %737 = vmatmul.f32.gmra.mxu0 %v433
        %v738 = vpop.f32.mrf.mxu0
        %v739 = vadd.f32 %v576, %v738
        %740 = vmatmul.f32.gmra.mxu0 %v436
        %v741 = vpop.f32.mrf.mxu0
        %v742 = vadd.f32 %v581, %v741
        %743 = vmatmul.f32.gmra.mxu0 %v439
        %v744 = vpop.f32.mrf.mxu0
        %v745 = vadd.f32 %v586, %v744
        %746 = vmatmul.f32.gmra.mxu0 %v442
        %v747 = vpop.f32.mrf.mxu0
        %v748 = vadd.f32 %v591, %v747
        %749 = vmatmul.f32.gmra.mxu0 %v445
        %v750 = vpop.f32.mrf.mxu0
        %v751 = vadd.f32 %v596, %v750
        %752 = vmatmul.f32.gmra.mxu0 %v448
        %v753 = vpop.f32.mrf.mxu0
        %v754 = vadd.f32 %v601, %v753
        %755 = vmatmul.f32.gmra.mxu0 %v451
        %v756 = vpop.f32.mrf.mxu0
        %v757 = vadd.f32 %v606, %v756
        %758 = vmatmul.f32.gmra.mxu0 %v454
        %v759 = vpop.f32.mrf.mxu0
        %v760 = vadd.f32 %v611, %v759
        %761 = vmatmul.f32.gmra.mxu0 %v457
        %v762 = vpop.f32.mrf.mxu0
        %v763 = vadd.f32 %v616, %v762
        %764 = vmatmul.f32.gmra.mxu0 %v460
        %v765 = vpop.f32.mrf.mxu0
        %v766 = vadd.f32 %v621, %v765
        %767 = vmatmul.f32.gmra.mxu0 %v463
        %v768 = vpop.f32.mrf.mxu0
        %v769 = vadd.f32 %v626, %v768
        %770 = vmatmul.f32.gmra.mxu0 %v466
        %v771 = vpop.f32.mrf.mxu0
        %v772 = vadd.f32 %v631, %v771
        %773 = vmatmul.f32.gmra.mxu0 %v469
        %v774 = vpop.f32.mrf.mxu0
        %v775 = vadd.f32 %v636, %v774
        %776 = vmatmul.f32.gmra.mxu0 %v472
        %v777 = vpop.f32.mrf.mxu0
        %v778 = vadd.f32 %v641, %v777
        %779 = vmatmul.f32.gmra.mxu0 %v475
        %v780 = vpop.f32.mrf.mxu0
        %v781 = vadd.f32 %v646, %v780
        %782 = vmatmul.f32.gmra.mxu0 %v478
        %v783 = vpop.f32.mrf.mxu0
        %v784 = vadd.f32 %v651, %v783
        %785 = vmatmul.f32.gmra.mxu0 %v481
        %v786 = vpop.f32.mrf.mxu0
        %v787 = vadd.f32 %v656, %v786
        %788 = vmatmul.f32.gmra.mxu0 %v484
        %v789 = vpop.f32.mrf.mxu0
        %v790 = vadd.f32 %v661, %v789
        %791 = vmatmul.f32.gmra.mxu0 %v487
        %v792 = vpop.f32.mrf.mxu0
        %v793 = vadd.f32 %v666, %v792
        %794 = vmatmul.f32.gmra.mxu0 %v490
        %v795 = vpop.f32.mrf.mxu0
        %v796 = vadd.f32 %v671, %v795
        %797 = vmatmul.f32.gmra.mxu0 %v493
        %v798 = vpop.f32.mrf.mxu0
        %v799 = vadd.f32 %v676, %v798
        %800 = vmatmul.f32.gmra.mxu0 %v496
        %v801 = vpop.f32.mrf.mxu0
        %v802 = vadd.f32 %v681, %v801
        %803 = vmatmul.f32.gmra.mxu0 %v499
        %v804 = vpop.f32.mrf.mxu0
        %v805 = vadd.f32 %v686, %v804
        %806 = vmatmul.f32.gmra.mxu0 %v502
        %v807 = vpop.f32.mrf.mxu0
        %v808 = vadd.f32 %v691, %v807
        %809 = vmatmul.f32.gmra.mxu0 %v505
        %v810 = vpop.f32.mrf.mxu0
        %v811 = vadd.f32 %v696, %v810
        %812 = vmatmul.f32.gmra.mxu0 %v508
        %v813 = vpop.f32.mrf.mxu0
        %v814 = vadd.f32 %v701, %v813
        %815 = vdwg.mxu0
        %816 = vmatpush.msra.mxu0 %v381
        %817 = vmatpush.msra.mxu0 %v379
        %818 = vmatpush.msra.mxu0 %v377
        %819 = vmatpush.msra.mxu0 %v375
        %820 = vmatpush.msra.mxu0 %v373
        %821 = vmatpush.msra.mxu0 %v371
        %822 = vmatpush.msra.mxu0 %v369
        %823 = vmatpush.msra.mxu0 %v367
        %824 = vmatpush.msra.mxu0 %v365
        %825 = vmatpush.msra.mxu0 %v363
        %826 = vmatpush.msra.mxu0 %v361
        %827 = vmatpush.msra.mxu0 %v359
        %828 = vmatpush.msra.mxu0 %v357
        %829 = vmatpush.msra.mxu0 %v355
        %830 = vmatpush.msra.mxu0 %v353
        %831 = vmatpush.msra.mxu0 %v351
        %832 = vmatmul.f32.gmra.mxu0 %v416
        %v833 = vpop.f32.mrf.mxu0
        %v834 = vadd.f32 %v721, %v833
        %835 = vmatmul.f32.gmra.mxu0 %v419
        %v836 = vpop.f32.mrf.mxu0
        %v837 = vadd.f32 %v724, %v836
        %838 = vmatmul.f32.gmra.mxu0 %v422
        %v839 = vpop.f32.mrf.mxu0
        %v840 = vadd.f32 %v727, %v839
        %841 = vmatmul.f32.gmra.mxu0 %v425
        %v842 = vpop.f32.mrf.mxu0
        %v843 = vadd.f32 %v730, %v842
        %844 = vmatmul.f32.gmra.mxu0 %v428
        %v845 = vpop.f32.mrf.mxu0
        %v846 = vadd.f32 %v733, %v845
        %847 = vmatmul.f32.gmra.mxu0 %v431
        %v848 = vpop.f32.mrf.mxu0
        %v849 = vadd.f32 %v736, %v848
        %850 = vmatmul.f32.gmra.mxu0 %v434
        %v851 = vpop.f32.mrf.mxu0
        %v852 = vadd.f32 %v739, %v851
        %853 = vmatmul.f32.gmra.mxu0 %v437
        %v854 = vpop.f32.mrf.mxu0
        %v855 = vadd.f32 %v742, %v854
        %856 = vmatmul.f32.gmra.mxu0 %v440
        %v857 = vpop.f32.mrf.mxu0
        %v858 = vadd.f32 %v745, %v857
        %859 = vmatmul.f32.gmra.mxu0 %v443
        %v860 = vpop.f32.mrf.mxu0
        %v861 = vadd.f32 %v748, %v860
        %862 = vmatmul.f32.gmra.mxu0 %v446
        %v863 = vpop.f32.mrf.mxu0
        %v864 = vadd.f32 %v751, %v863
        %865 = vmatmul.f32.gmra.mxu0 %v449
        %v866 = vpop.f32.mrf.mxu0
        %v867 = vadd.f32 %v754, %v866
        %868 = vmatmul.f32.gmra.mxu0 %v452
        %v869 = vpop.f32.mrf.mxu0
        %v870 = vadd.f32 %v757, %v869
        %871 = vmatmul.f32.gmra.mxu0 %v455
        %v872 = vpop.f32.mrf.mxu0
        %v873 = vadd.f32 %v760, %v872
        %874 = vmatmul.f32.gmra.mxu0 %v458
        %v875 = vpop.f32.mrf.mxu0
        %v876 = vadd.f32 %v763, %v875
        %877 = vmatmul.f32.gmra.mxu0 %v461
        %v878 = vpop.f32.mrf.mxu0
        %v879 = vadd.f32 %v766, %v878
        %880 = vmatmul.f32.gmra.mxu0 %v464
        %v881 = vpop.f32.mrf.mxu0
        %v882 = vadd.f32 %v769, %v881
        %883 = vmatmul.f32.gmra.mxu0 %v467
        %v884 = vpop.f32.mrf.mxu0
        %v885 = vadd.f32 %v772, %v884
        %886 = vmatmul.f32.gmra.mxu0 %v470
        %v887 = vpop.f32.mrf.mxu0
        %v888 = vadd.f32 %v775, %v887
        %889 = vmatmul.f32.gmra.mxu0 %v473
        %v890 = vpop.f32.mrf.mxu0
        %v891 = vadd.f32 %v778, %v890
        %892 = vmatmul.f32.gmra.mxu0 %v476
        %v893 = vpop.f32.mrf.mxu0
        %v894 = vadd.f32 %v781, %v893
        %895 = vmatmul.f32.gmra.mxu0 %v479
        %v896 = vpop.f32.mrf.mxu0
        %v897 = vadd.f32 %v784, %v896
        %898 = vmatmul.f32.gmra.mxu0 %v482
        %v899 = vpop.f32.mrf.mxu0
        %v900 = vadd.f32 %v787, %v899
        %901 = vmatmul.f32.gmra.mxu0 %v485
        %v902 = vpop.f32.mrf.mxu0
        %v903 = vadd.f32 %v790, %v902
        %904 = vmatmul.f32.gmra.mxu0 %v488
        %v905 = vpop.f32.mrf.mxu0
        %v906 = vadd.f32 %v793, %v905
        %907 = vmatmul.f32.gmra.mxu0 %v491
        %v908 = vpop.f32.mrf.mxu0
        %v909 = vadd.f32 %v796, %v908
        %910 = vmatmul.f32.gmra.mxu0 %v494
        %v911 = vpop.f32.mrf.mxu0
        %v912 = vadd.f32 %v799, %v911
        %913 = vmatmul.f32.gmra.mxu0 %v497
        %v914 = vpop.f32.mrf.mxu0
        %v915 = vadd.f32 %v802, %v914
        %916 = vmatmul.f32.gmra.mxu0 %v500
        %v917 = vpop.f32.mrf.mxu0
        %v918 = vadd.f32 %v805, %v917
        %919 = vmatmul.f32.gmra.mxu0 %v503
        %v920 = vpop.f32.mrf.mxu0
        %v921 = vadd.f32 %v808, %v920
        %922 = vmatmul.f32.gmra.mxu0 %v506
        %v923 = vpop.f32.mrf.mxu0
        %v924 = vadd.f32 %v811, %v923
        %925 = vmatmul.f32.gmra.mxu0 %v509
        %v926 = vpop.f32.mrf.mxu0
        %v927 = vadd.f32 %v814, %v926
        %928 = vdwg.mxu0
        %929 = vmatpush.msra.mxu0 %v413
        %930 = vmatpush.msra.mxu0 %v411
        %931 = vmatpush.msra.mxu0 %v409
        %932 = vmatpush.msra.mxu0 %v407
        %933 = vmatpush.msra.mxu0 %v405
        %934 = vmatpush.msra.mxu0 %v403
        %935 = vmatpush.msra.mxu0 %v401
        %936 = vmatpush.msra.mxu0 %v399
        %937 = vmatpush.msra.mxu0 %v397
        %938 = vmatpush.msra.mxu0 %v395
        %939 = vmatpush.msra.mxu0 %v393
        %940 = vmatpush.msra.mxu0 %v391
        %941 = vmatpush.msra.mxu0 %v389
        %942 = vmatpush.msra.mxu0 %v387
        %943 = vmatpush.msra.mxu0 %v385
        %944 = vmatpush.msra.mxu0 %v383
        %945 = vmatmul.f32.gmra.mxu0 %v417
        %v946 = vpop.f32.mrf.mxu0
        %v947 = vadd.f32 %v834, %v946
        %948 = vmatmul.f32.gmra.mxu0 %v420
        %v949 = vpop.f32.mrf.mxu0
        %v950 = vadd.f32 %v837, %v949
        %951 = vmatmul.f32.gmra.mxu0 %v423
        %v952 = vpop.f32.mrf.mxu0
        %v953 = vadd.f32 %v840, %v952
        %954 = vmatmul.f32.gmra.mxu0 %v426
        %v955 = vpop.f32.mrf.mxu0
        %v956 = vadd.f32 %v843, %v955
        %957 = vmatmul.f32.gmra.mxu0 %v429
        %v958 = vpop.f32.mrf.mxu0
        %v959 = vadd.f32 %v846, %v958
        %960 = vmatmul.f32.gmra.mxu0 %v432
        %v961 = vpop.f32.mrf.mxu0
        %v962 = vadd.f32 %v849, %v961
        %963 = vmatmul.f32.gmra.mxu0 %v435
        %v964 = vpop.f32.mrf.mxu0
        %v965 = vadd.f32 %v852, %v964
        %966 = vmatmul.f32.gmra.mxu0 %v438
        %v967 = vpop.f32.mrf.mxu0
        %v968 = vadd.f32 %v855, %v967
        %969 = vmatmul.f32.gmra.mxu0 %v441
        %v970 = vpop.f32.mrf.mxu0
        %v971 = vadd.f32 %v858, %v970
        %972 = vmatmul.f32.gmra.mxu0 %v444
        %v973 = vpop.f32.mrf.mxu0
        %v974 = vadd.f32 %v861, %v973
        %975 = vmatmul.f32.gmra.mxu0 %v447
        %v976 = vpop.f32.mrf.mxu0
        %v977 = vadd.f32 %v864, %v976
        %978 = vmatmul.f32.gmra.mxu0 %v450
        %v979 = vpop.f32.mrf.mxu0
        %v980 = vadd.f32 %v867, %v979
        %981 = vmatmul.f32.gmra.mxu0 %v453
        %v982 = vpop.f32.mrf.mxu0
        %v983 = vadd.f32 %v870, %v982
        %984 = vmatmul.f32.gmra.mxu0 %v456
        %v985 = vpop.f32.mrf.mxu0
        %v986 = vadd.f32 %v873, %v985
        %987 = vmatmul.f32.gmra.mxu0 %v459
        %v988 = vpop.f32.mrf.mxu0
        %v989 = vadd.f32 %v876, %v988
        %990 = vmatmul.f32.gmra.mxu0 %v462
        %v991 = vpop.f32.mrf.mxu0
        %v992 = vadd.f32 %v879, %v991
        %993 = vmatmul.f32.gmra.mxu0 %v465
        %v994 = vpop.f32.mrf.mxu0
        %v995 = vadd.f32 %v882, %v994
        %996 = vmatmul.f32.gmra.mxu0 %v468
        %v997 = vpop.f32.mrf.mxu0
        %v998 = vadd.f32 %v885, %v997
        %999 = vmatmul.f32.gmra.mxu0 %v471
        %v1000 = vpop.f32.mrf.mxu0
        %v1001 = vadd.f32 %v888, %v1000
        %1002 = vmatmul.f32.gmra.mxu0 %v474
        %v1003 = vpop.f32.mrf.mxu0
        %v1004 = vadd.f32 %v891, %v1003
        %1005 = vmatmul.f32.gmra.mxu0 %v477
        %v1006 = vpop.f32.mrf.mxu0
        %v1007 = vadd.f32 %v894, %v1006
        %1008 = vmatmul.f32.gmra.mxu0 %v480
        %v1009 = vpop.f32.mrf.mxu0
        %v1010 = vadd.f32 %v897, %v1009
        %1011 = vmatmul.f32.gmra.mxu0 %v483
        %v1012 = vpop.f32.mrf.mxu0
        %v1013 = vadd.f32 %v900, %v1012
        %1014 = vmatmul.f32.gmra.mxu0 %v486
        %v1015 = vpop.f32.mrf.mxu0
        %v1016 = vadd.f32 %v903, %v1015
        %1017 = vmatmul.f32.gmra.mxu0 %v489
        %v1018 = vpop.f32.mrf.mxu0
        %v1019 = vadd.f32 %v906, %v1018
        %1020 = vmatmul.f32.gmra.mxu0 %v492
        %v1021 = vpop.f32.mrf.mxu0
        %v1022 = vadd.f32 %v909, %v1021
        %1023 = vmatmul.f32.gmra.mxu0 %v495
        %v1024 = vpop.f32.mrf.mxu0
        %v1025 = vadd.f32 %v912, %v1024
        %1026 = vmatmul.f32.gmra.mxu0 %v498
        %v1027 = vpop.f32.mrf.mxu0
        %v1028 = vadd.f32 %v915, %v1027
        %1029 = vmatmul.f32.gmra.mxu0 %v501
        %v1030 = vpop.f32.mrf.mxu0
        %v1031 = vadd.f32 %v918, %v1030
        %1032 = vmatmul.f32.gmra.mxu0 %v504
        %v1033 = vpop.f32.mrf.mxu0
        %v1034 = vadd.f32 %v921, %v1033
        %1035 = vmatmul.f32.gmra.mxu0 %v507
        %v1036 = vpop.f32.mrf.mxu0
        %v1037 = vadd.f32 %v924, %v1036
        %1038 = vmatmul.f32.gmra.mxu0 %v510
        %v1039 = vpop.f32.mrf.mxu0
        %v1040 = vadd.f32 %v927, %v1039
        %1041 = vdwg.mxu0
        %1042 = vmatpush.msra.mxu0 %v350
        %1043 = vmatpush.msra.mxu0 %v348
        %1044 = vmatpush.msra.mxu0 %v346
        %1045 = vmatpush.msra.mxu0 %v344
        %1046 = vmatpush.msra.mxu0 %v342
        %1047 = vmatpush.msra.mxu0 %v340
        %1048 = vmatpush.msra.mxu0 %v338
        %1049 = vmatpush.msra.mxu0 %v336
        %1050 = vmatpush.msra.mxu0 %v334
        %1051 = vmatpush.msra.mxu0 %v332
        %1052 = vmatpush.msra.mxu0 %v330
        %1053 = vmatpush.msra.mxu0 %v328
        %1054 = vmatpush.msra.mxu0 %v326
        %1055 = vmatpush.msra.mxu0 %v324
        %1056 = vmatpush.msra.mxu0 %v322
        %1057 = vmatpush.msra.mxu0 %v320
        %1058 = vmatmul.f32.gmra.mxu0 %v415
        %v1059 = vpop.f32.mrf.mxu0
        %v1060 = vadd.f32 %v546, %v1059
        %1061 = vmatmul.f32.gmra.mxu0 %v418
        %v1062 = vpop.f32.mrf.mxu0
        %v1063 = vadd.f32 %v551, %v1062
        %1064 = vmatmul.f32.gmra.mxu0 %v421
        %v1065 = vpop.f32.mrf.mxu0
        %v1066 = vadd.f32 %v556, %v1065
        %1067 = vmatmul.f32.gmra.mxu0 %v424
        %v1068 = vpop.f32.mrf.mxu0
        %v1069 = vadd.f32 %v561, %v1068
        %1070 = vmatmul.f32.gmra.mxu0 %v427
        %v1071 = vpop.f32.mrf.mxu0
        %v1072 = vadd.f32 %v566, %v1071
        %1073 = vmatmul.f32.gmra.mxu0 %v430
        %v1074 = vpop.f32.mrf.mxu0
        %v1075 = vadd.f32 %v571, %v1074
        %1076 = vmatmul.f32.gmra.mxu0 %v433
        %v1077 = vpop.f32.mrf.mxu0
        %v1078 = vadd.f32 %v576, %v1077
        %1079 = vmatmul.f32.gmra.mxu0 %v436
        %v1080 = vpop.f32.mrf.mxu0
        %v1081 = vadd.f32 %v581, %v1080
        %1082 = vmatmul.f32.gmra.mxu0 %v439
        %v1083 = vpop.f32.mrf.mxu0
        %v1084 = vadd.f32 %v586, %v1083
        %1085 = vmatmul.f32.gmra.mxu0 %v442
        %v1086 = vpop.f32.mrf.mxu0
        %v1087 = vadd.f32 %v591, %v1086
        %1088 = vmatmul.f32.gmra.mxu0 %v445
        %v1089 = vpop.f32.mrf.mxu0
        %v1090 = vadd.f32 %v596, %v1089
        %1091 = vmatmul.f32.gmra.mxu0 %v448
        %v1092 = vpop.f32.mrf.mxu0
        %v1093 = vadd.f32 %v601, %v1092
        %1094 = vmatmul.f32.gmra.mxu0 %v451
        %v1095 = vpop.f32.mrf.mxu0
        %v1096 = vadd.f32 %v606, %v1095
        %1097 = vmatmul.f32.gmra.mxu0 %v454
        %v1098 = vpop.f32.mrf.mxu0
        %v1099 = vadd.f32 %v611, %v1098
        %1100 = vmatmul.f32.gmra.mxu0 %v457
        %v1101 = vpop.f32.mrf.mxu0
        %v1102 = vadd.f32 %v616, %v1101
        %1103 = vmatmul.f32.gmra.mxu0 %v460
        %v1104 = vpop.f32.mrf.mxu0
        %v1105 = vadd.f32 %v621, %v1104
        %1106 = vmatmul.f32.gmra.mxu0 %v463
        %v1107 = vpop.f32.mrf.mxu0
        %v1108 = vadd.f32 %v626, %v1107
        %1109 = vmatmul.f32.gmra.mxu0 %v466
        %v1110 = vpop.f32.mrf.mxu0
        %v1111 = vadd.f32 %v631, %v1110
        %1112 = vmatmul.f32.gmra.mxu0 %v469
        %v1113 = vpop.f32.mrf.mxu0
        %v1114 = vadd.f32 %v636, %v1113
        %1115 = vmatmul.f32.gmra.mxu0 %v472
        %v1116 = vpop.f32.mrf.mxu0
        %v1117 = vadd.f32 %v641, %v1116
        %1118 = vmatmul.f32.gmra.mxu0 %v475
        %v1119 = vpop.f32.mrf.mxu0
        %v1120 = vadd.f32 %v646, %v1119
        %1121 = vmatmul.f32.gmra.mxu0 %v478
        %v1122 = vpop.f32.mrf.mxu0
        %v1123 = vadd.f32 %v651, %v1122
        %1124 = vmatmul.f32.gmra.mxu0 %v481
        %v1125 = vpop.f32.mrf.mxu0
        %v1126 = vadd.f32 %v656, %v1125
        %1127 = vmatmul.f32.gmra.mxu0 %v484
        %v1128 = vpop.f32.mrf.mxu0
        %v1129 = vadd.f32 %v661, %v1128
        %1130 = vmatmul.f32.gmra.mxu0 %v487
        %v1131 = vpop.f32.mrf.mxu0
        %v1132 = vadd.f32 %v666, %v1131
        %1133 = vmatmul.f32.gmra.mxu0 %v490
        %v1134 = vpop.f32.mrf.mxu0
        %v1135 = vadd.f32 %v671, %v1134
        %1136 = vmatmul.f32.gmra.mxu0 %v493
        %v1137 = vpop.f32.mrf.mxu0
        %v1138 = vadd.f32 %v676, %v1137
        %1139 = vmatmul.f32.gmra.mxu0 %v496
        %v1140 = vpop.f32.mrf.mxu0
        %v1141 = vadd.f32 %v681, %v1140
        %1142 = vmatmul.f32.gmra.mxu0 %v499
        %v1143 = vpop.f32.mrf.mxu0
        %v1144 = vadd.f32 %v686, %v1143
        %1145 = vmatmul.f32.gmra.mxu0 %v502
        %v1146 = vpop.f32.mrf.mxu0
        %v1147 = vadd.f32 %v691, %v1146
        %1148 = vmatmul.f32.gmra.mxu0 %v505
        %v1149 = vpop.f32.mrf.mxu0
        %v1150 = vadd.f32 %v696, %v1149
        %1151 = vmatmul.f32.gmra.mxu0 %v508
        %v1152 = vpop.f32.mrf.mxu0
        %v1153 = vadd.f32 %v701, %v1152
        %1154 = vdwg.mxu0
        %1155 = vmatpush.msra.mxu0 %v382
        %1156 = vmatpush.msra.mxu0 %v380
        %1157 = vmatpush.msra.mxu0 %v378
        %1158 = vmatpush.msra.mxu0 %v376
        %1159 = vmatpush.msra.mxu0 %v374
        %1160 = vmatpush.msra.mxu0 %v372
        %1161 = vmatpush.msra.mxu0 %v370
        %1162 = vmatpush.msra.mxu0 %v368
        %1163 = vmatpush.msra.mxu0 %v366
        %1164 = vmatpush.msra.mxu0 %v364
        %1165 = vmatpush.msra.mxu0 %v362
        %1166 = vmatpush.msra.mxu0 %v360
        %1167 = vmatpush.msra.mxu0 %v358
        %1168 = vmatpush.msra.mxu0 %v356
        %1169 = vmatpush.msra.mxu0 %v354
        %1170 = vmatpush.msra.mxu0 %v352
        %1171 = vmatmul.f32.gmra.mxu0 %v416
        %v1172 = vpop.f32.mrf.mxu0
        %v1173 = vadd.f32 %v1060, %v1172
        %1174 = vmatmul.f32.gmra.mxu0 %v419
        %v1175 = vpop.f32.mrf.mxu0
        %v1176 = vadd.f32 %v1063, %v1175
        %1177 = vmatmul.f32.gmra.mxu0 %v422
        %v1178 = vpop.f32.mrf.mxu0
        %v1179 = vadd.f32 %v1066, %v1178
        %1180 = vmatmul.f32.gmra.mxu0 %v425
        %v1181 = vpop.f32.mrf.mxu0
        %v1182 = vadd.f32 %v1069, %v1181
        %1183 = vmatmul.f32.gmra.mxu0 %v428
        %v1184 = vpop.f32.mrf.mxu0
        %v1185 = vadd.f32 %v1072, %v1184
        %1186 = vmatmul.f32.gmra.mxu0 %v431
        %v1187 = vpop.f32.mrf.mxu0
        %v1188 = vadd.f32 %v1075, %v1187
        %1189 = vmatmul.f32.gmra.mxu0 %v434
        %v1190 = vpop.f32.mrf.mxu0
        %v1191 = vadd.f32 %v1078, %v1190
        %1192 = vmatmul.f32.gmra.mxu0 %v437
        %v1193 = vpop.f32.mrf.mxu0
        %v1194 = vadd.f32 %v1081, %v1193
        %1195 = vmatmul.f32.gmra.mxu0 %v440
        %v1196 = vpop.f32.mrf.mxu0
        %v1197 = vadd.f32 %v1084, %v1196
        %1198 = vmatmul.f32.gmra.mxu0 %v443
        %v1199 = vpop.f32.mrf.mxu0
        %v1200 = vadd.f32 %v1087, %v1199
        %1201 = vmatmul.f32.gmra.mxu0 %v446
        %v1202 = vpop.f32.mrf.mxu0
        %v1203 = vadd.f32 %v1090, %v1202
        %1204 = vmatmul.f32.gmra.mxu0 %v449
        %v1205 = vpop.f32.mrf.mxu0
        %v1206 = vadd.f32 %v1093, %v1205
        %1207 = vmatmul.f32.gmra.mxu0 %v452
        %v1208 = vpop.f32.mrf.mxu0
        %v1209 = vadd.f32 %v1096, %v1208
        %1210 = vmatmul.f32.gmra.mxu0 %v455
        %v1211 = vpop.f32.mrf.mxu0
        %v1212 = vadd.f32 %v1099, %v1211
        %1213 = vmatmul.f32.gmra.mxu0 %v458
        %v1214 = vpop.f32.mrf.mxu0
        %v1215 = vadd.f32 %v1102, %v1214
        %1216 = vmatmul.f32.gmra.mxu0 %v461
        %v1217 = vpop.f32.mrf.mxu0
        %v1218 = vadd.f32 %v1105, %v1217
        %1219 = vmatmul.f32.gmra.mxu0 %v464
        %v1220 = vpop.f32.mrf.mxu0
        %v1221 = vadd.f32 %v1108, %v1220
        %1222 = vmatmul.f32.gmra.mxu0 %v467
        %v1223 = vpop.f32.mrf.mxu0
        %v1224 = vadd.f32 %v1111, %v1223
        %1225 = vmatmul.f32.gmra.mxu0 %v470
        %v1226 = vpop.f32.mrf.mxu0
        %v1227 = vadd.f32 %v1114, %v1226
        %1228 = vmatmul.f32.gmra.mxu0 %v473
        %v1229 = vpop.f32.mrf.mxu0
        %v1230 = vadd.f32 %v1117, %v1229
        %1231 = vmatmul.f32.gmra.mxu0 %v476
        %v1232 = vpop.f32.mrf.mxu0
        %v1233 = vadd.f32 %v1120, %v1232
        %1234 = vmatmul.f32.gmra.mxu0 %v479
        %v1235 = vpop.f32.mrf.mxu0
        %v1236 = vadd.f32 %v1123, %v1235
        %1237 = vmatmul.f32.gmra.mxu0 %v482
        %v1238 = vpop.f32.mrf.mxu0
        %v1239 = vadd.f32 %v1126, %v1238
        %1240 = vmatmul.f32.gmra.mxu0 %v485
        %v1241 = vpop.f32.mrf.mxu0
        %v1242 = vadd.f32 %v1129, %v1241
        %1243 = vmatmul.f32.gmra.mxu0 %v488
        %v1244 = vpop.f32.mrf.mxu0
        %v1245 = vadd.f32 %v1132, %v1244
        %1246 = vmatmul.f32.gmra.mxu0 %v491
        %v1247 = vpop.f32.mrf.mxu0
        %v1248 = vadd.f32 %v1135, %v1247
        %1249 = vmatmul.f32.gmra.mxu0 %v494
        %v1250 = vpop.f32.mrf.mxu0
        %v1251 = vadd.f32 %v1138, %v1250
        %1252 = vmatmul.f32.gmra.mxu0 %v497
        %v1253 = vpop.f32.mrf.mxu0
        %v1254 = vadd.f32 %v1141, %v1253
        %1255 = vmatmul.f32.gmra.mxu0 %v500
        %v1256 = vpop.f32.mrf.mxu0
        %v1257 = vadd.f32 %v1144, %v1256
        %1258 = vmatmul.f32.gmra.mxu0 %v503
        %v1259 = vpop.f32.mrf.mxu0
        %v1260 = vadd.f32 %v1147, %v1259
        %1261 = vmatmul.f32.gmra.mxu0 %v506
        %v1262 = vpop.f32.mrf.mxu0
        %v1263 = vadd.f32 %v1150, %v1262
        %1264 = vmatmul.f32.gmra.mxu0 %v509
        %v1265 = vpop.f32.mrf.mxu0
        %v1266 = vadd.f32 %v1153, %v1265
        %1267 = vdwg.mxu0
        %1268 = vmatpush.msra.mxu0 %v414
        %1269 = vmatpush.msra.mxu0 %v412
        %1270 = vmatpush.msra.mxu0 %v410
        %1271 = vmatpush.msra.mxu0 %v408
        %1272 = vmatpush.msra.mxu0 %v406
        %1273 = vmatpush.msra.mxu0 %v404
        %1274 = vmatpush.msra.mxu0 %v402
        %1275 = vmatpush.msra.mxu0 %v400
        %1276 = vmatpush.msra.mxu0 %v398
        %1277 = vmatpush.msra.mxu0 %v396
        %1278 = vmatpush.msra.mxu0 %v394
        %1279 = vmatpush.msra.mxu0 %v392
        %1280 = vmatpush.msra.mxu0 %v390
        %1281 = vmatpush.msra.mxu0 %v388
        %1282 = vmatpush.msra.mxu0 %v386
        %1283 = vmatpush.msra.mxu0 %v384
        %1284 = vmatmul.f32.gmra.mxu0 %v417
        %v1285 = vpop.f32.mrf.mxu0
        %v1286 = vadd.f32 %v1173, %v1285
        %1287 = vmatmul.f32.gmra.mxu0 %v420
        %v1288 = vpop.f32.mrf.mxu0
        %v1289 = vadd.f32 %v1176, %v1288
        %1290 = vmatmul.f32.gmra.mxu0 %v423
        %v1291 = vpop.f32.mrf.mxu0
        %v1292 = vadd.f32 %v1179, %v1291
        %1293 = vmatmul.f32.gmra.mxu0 %v426
        %v1294 = vpop.f32.mrf.mxu0
        %v1295 = vadd.f32 %v1182, %v1294
        %1296 = vmatmul.f32.gmra.mxu0 %v429
        %v1297 = vpop.f32.mrf.mxu0
        %v1298 = vadd.f32 %v1185, %v1297
        %1299 = vmatmul.f32.gmra.mxu0 %v432
        %v1300 = vpop.f32.mrf.mxu0
        %v1301 = vadd.f32 %v1188, %v1300
        %1302 = vmatmul.f32.gmra.mxu0 %v435
        %v1303 = vpop.f32.mrf.mxu0
        %v1304 = vadd.f32 %v1191, %v1303
        %1305 = vmatmul.f32.gmra.mxu0 %v438
        %v1306 = vpop.f32.mrf.mxu0
        %v1307 = vadd.f32 %v1194, %v1306
        %1308 = vmatmul.f32.gmra.mxu0 %v441
        %v1309 = vpop.f32.mrf.mxu0
        %v1310 = vadd.f32 %v1197, %v1309
        %1311 = vmatmul.f32.gmra.mxu0 %v444
        %v1312 = vpop.f32.mrf.mxu0
        %v1313 = vadd.f32 %v1200, %v1312
        %1314 = vmatmul.f32.gmra.mxu0 %v447
        %v1315 = vpop.f32.mrf.mxu0
        %v1316 = vadd.f32 %v1203, %v1315
        %1317 = vmatmul.f32.gmra.mxu0 %v450
        %v1318 = vpop.f32.mrf.mxu0
        %v1319 = vadd.f32 %v1206, %v1318
        %1320 = vmatmul.f32.gmra.mxu0 %v453
        %v1321 = vpop.f32.mrf.mxu0
        %v1322 = vadd.f32 %v1209, %v1321
        %1323 = vmatmul.f32.gmra.mxu0 %v456
        %v1324 = vpop.f32.mrf.mxu0
        %v1325 = vadd.f32 %v1212, %v1324
        %1326 = vmatmul.f32.gmra.mxu0 %v459
        %v1327 = vpop.f32.mrf.mxu0
        %v1328 = vadd.f32 %v1215, %v1327
        %1329 = vmatmul.f32.gmra.mxu0 %v462
        %v1330 = vpop.f32.mrf.mxu0
        %v1331 = vadd.f32 %v1218, %v1330
        %1332 = vmatmul.f32.gmra.mxu0 %v465
        %v1333 = vpop.f32.mrf.mxu0
        %v1334 = vadd.f32 %v1221, %v1333
        %1335 = vmatmul.f32.gmra.mxu0 %v468
        %v1336 = vpop.f32.mrf.mxu0
        %v1337 = vadd.f32 %v1224, %v1336
        %1338 = vmatmul.f32.gmra.mxu0 %v471
        %v1339 = vpop.f32.mrf.mxu0
        %v1340 = vadd.f32 %v1227, %v1339
        %1341 = vmatmul.f32.gmra.mxu0 %v474
        %v1342 = vpop.f32.mrf.mxu0
        %v1343 = vadd.f32 %v1230, %v1342
        %1344 = vmatmul.f32.gmra.mxu0 %v477
        %v1345 = vpop.f32.mrf.mxu0
        %v1346 = vadd.f32 %v1233, %v1345
        %1347 = vmatmul.f32.gmra.mxu0 %v480
        %v1348 = vpop.f32.mrf.mxu0
        %v1349 = vadd.f32 %v1236, %v1348
        %1350 = vmatmul.f32.gmra.mxu0 %v483
        %v1351 = vpop.f32.mrf.mxu0
        %v1352 = vadd.f32 %v1239, %v1351
        %1353 = vmatmul.f32.gmra.mxu0 %v486
        %v1354 = vpop.f32.mrf.mxu0
        %v1355 = vadd.f32 %v1242, %v1354
        %1356 = vmatmul.f32.gmra.mxu0 %v489
        %v1357 = vpop.f32.mrf.mxu0
        %v1358 = vadd.f32 %v1245, %v1357
        %1359 = vmatmul.f32.gmra.mxu0 %v492
        %v1360 = vpop.f32.mrf.mxu0
        %v1361 = vadd.f32 %v1248, %v1360
        %1362 = vmatmul.f32.gmra.mxu0 %v495
        %v1363 = vpop.f32.mrf.mxu0
        %v1364 = vadd.f32 %v1251, %v1363
        %1365 = vmatmul.f32.gmra.mxu0 %v498
        %v1366 = vpop.f32.mrf.mxu0
        %v1367 = vadd.f32 %v1254, %v1366
        %1368 = vmatmul.f32.gmra.mxu0 %v501
        %v1369 = vpop.f32.mrf.mxu0
        %v1370 = vadd.f32 %v1257, %v1369
        %1371 = vmatmul.f32.gmra.mxu0 %v504
        %v1372 = vpop.f32.mrf.mxu0
        %v1373 = vadd.f32 %v1260, %v1372
        %1374 = vmatmul.f32.gmra.mxu0 %v507
        %v1375 = vpop.f32.mrf.mxu0
        %v1376 = vadd.f32 %v1263, %v1375
        %1377 = vmatmul.f32.gmra.mxu0 %v510
        %v1378 = vpop.f32.mrf.mxu0
        %v1379 = vadd.f32 %v1266, %v1378
        %1380 = vdwg.mxu0
        %v1381 = vmax.f32 %v947, 0.0
        %v1382 = vmax.f32 %v1286, 0.0
        %v1383 = vmax.f32 %v950, 0.0
        %v1384 = vmax.f32 %v1289, 0.0
        %v1385 = vmax.f32 %v953, 0.0
        %v1386 = vmax.f32 %v1292, 0.0
        %v1387 = vmax.f32 %v956, 0.0
        %v1388 = vmax.f32 %v1295, 0.0
        %v1389 = vmax.f32 %v959, 0.0
        %v1390 = vmax.f32 %v1298, 0.0
        %v1391 = vmax.f32 %v962, 0.0
        %v1392 = vmax.f32 %v1301, 0.0
        %v1393 = vmax.f32 %v965, 0.0
        %v1394 = vmax.f32 %v1304, 0.0
        %v1395 = vmax.f32 %v968, 0.0
        %v1396 = vmax.f32 %v1307, 0.0
        %v1397 = vmax.f32 %v971, 0.0
        %v1398 = vmax.f32 %v1310, 0.0
        %v1399 = vmax.f32 %v974, 0.0
        %v1400 = vmax.f32 %v1313, 0.0
        %v1401 = vmax.f32 %v977, 0.0
        %v1402 = vmax.f32 %v1316, 0.0
        %v1403 = vmax.f32 %v980, 0.0
        %v1404 = vmax.f32 %v1319, 0.0
        %v1405 = vmax.f32 %v983, 0.0
        %v1406 = vmax.f32 %v1322, 0.0
        %v1407 = vmax.f32 %v986, 0.0
        %v1408 = vmax.f32 %v1325, 0.0
        %v1409 = vmax.f32 %v989, 0.0
        %v1410 = vmax.f32 %v1328, 0.0
        %v1411 = vmax.f32 %v992, 0.0
        %v1412 = vmax.f32 %v1331, 0.0
        %v1413 = vmax.f32 %v995, 0.0
        %v1414 = vmax.f32 %v1334, 0.0
        %v1415 = vmax.f32 %v998, 0.0
        %v1416 = vmax.f32 %v1337, 0.0
        %v1417 = vmax.f32 %v1001, 0.0
        %v1418 = vmax.f32 %v1340, 0.0
        %v1419 = vmax.f32 %v1004, 0.0
        %v1420 = vmax.f32 %v1343, 0.0
        %v1421 = vmax.f32 %v1007, 0.0
        %v1422 = vmax.f32 %v1346, 0.0
        %v1423 = vmax.f32 %v1010, 0.0
        %v1424 = vmax.f32 %v1349, 0.0
        %v1425 = vmax.f32 %v1013, 0.0
        %v1426 = vmax.f32 %v1352, 0.0
        %v1427 = vmax.f32 %v1016, 0.0
        %v1428 = vmax.f32 %v1355, 0.0
        %v1429 = vmax.f32 %v1019, 0.0
        %v1430 = vmax.f32 %v1358, 0.0
        %v1431 = vmax.f32 %v1022, 0.0
        %v1432 = vmax.f32 %v1361, 0.0
        %v1433 = vmax.f32 %v1025, 0.0
        %v1434 = vmax.f32 %v1364, 0.0
        %v1435 = vmax.f32 %v1028, 0.0
        %v1436 = vmax.f32 %v1367, 0.0
        %v1437 = vmax.f32 %v1031, 0.0
        %v1438 = vmax.f32 %v1370, 0.0
        %v1439 = vmax.f32 %v1034, 0.0
        %v1440 = vmax.f32 %v1373, 0.0
        %v1441 = vmax.f32 %v1037, 0.0
        %v1442 = vmax.f32 %v1376, 0.0
        %v1443 = vmax.f32 %v1040, 0.0
        %v1444 = vmax.f32 %v1379, 0.0
        %v1445 = vld [vmem:[%s3] sm:$0xff]
        %v1446 = vld [vmem:[%s3 + $0x8] sm:$0xff]
        %v1447 = vld [vmem:[%s3 + $0x10] sm:$0xff]
        %v1448 = vld [vmem:[%s3 + $0x18] sm:$0xff]
        %v1449 = vld [vmem:[%s3 + $0x20] sm:$0xff]
        %v1450 = vld [vmem:[%s3 + $0x28] sm:$0xff]
        %v1451 = vld [vmem:[%s3 + $0x30] sm:$0xff]
        %v1452 = vld [vmem:[%s3 + $0x38] sm:$0xff]
        %v1453 = vld [vmem:[%s3 + $0x40] sm:$0xff]
        %v1454 = vld [vmem:[%s3 + $0x48] sm:$0xff]
        %v1455 = vld [vmem:[%s3 + $0x50] sm:$0xff]
        %v1456 = vld [vmem:[%s3 + $0x58] sm:$0xff]
        %v1457 = vld [vmem:[%s3 + $0x60] sm:$0xff]
        %v1458 = vld [vmem:[%s3 + $0x68] sm:$0xff]
        %v1459 = vld [vmem:[%s3 + $0x70] sm:$0xff]
        %v1460 = vld [vmem:[%s3 + $0x78] sm:$0xff]
        %v1461 = vld [vmem:[%s3 + $0x80] sm:$0xff]
        %v1462 = vld [vmem:[%s3 + $0x88] sm:$0xff]
        %v1463 = vld [vmem:[%s3 + $0x90] sm:$0xff]
        %v1464 = vld [vmem:[%s3 + $0x98] sm:$0xff]
        %v1465 = vld [vmem:[%s3 + $0xa0] sm:$0xff]
        %v1466 = vld [vmem:[%s3 + $0xa8] sm:$0xff]
        %v1467 = vld [vmem:[%s3 + $0xb0] sm:$0xff]
        %v1468 = vld [vmem:[%s3 + $0xb8] sm:$0xff]
        %v1469 = vld [vmem:[%s3 + $0xc0] sm:$0xff]
        %v1470 = vld [vmem:[%s3 + $0xc8] sm:$0xff]
        %v1471 = vld [vmem:[%s3 + $0xd0] sm:$0xff]
        %v1472 = vld [vmem:[%s3 + $0xd8] sm:$0xff]
        %v1473 = vld [vmem:[%s3 + $0xe0] sm:$0xff]
        %v1474 = vld [vmem:[%s3 + $0xe8] sm:$0xff]
        %v1475 = vld [vmem:[%s3 + $0xf0] sm:$0xff]
        %v1476 = vld [vmem:[%s3 + $0xf8] sm:$0xff]
        %v1477 = vld [vmem:[%s4] sm:$0xff]
        %v1478 = vld [vmem:[%s4 + $0x8] sm:$0xff]
        %v1479 = vld [vmem:[%s4 + $0x10] sm:$0xff]
        %v1480 = vld [vmem:[%s4 + $0x18] sm:$0xff]
        %v1481 = vld [vmem:[%s4 + $0x20] sm:$0xff]
        %v1482 = vld [vmem:[%s4 + $0x28] sm:$0xff]
        %v1483 = vld [vmem:[%s4 + $0x30] sm:$0xff]
        %v1484 = vld [vmem:[%s4 + $0x38] sm:$0xff]
        %v1485 = vld [vmem:[%s4 + $0x40] sm:$0xff]
        %v1486 = vld [vmem:[%s4 + $0x48] sm:$0xff]
        %v1487 = vld [vmem:[%s4 + $0x50] sm:$0xff]
        %v1488 = vld [vmem:[%s4 + $0x58] sm:$0xff]
        %v1489 = vld [vmem:[%s4 + $0x60] sm:$0xff]
        %v1490 = vld [vmem:[%s4 + $0x68] sm:$0xff]
        %v1491 = vld [vmem:[%s4 + $0x70] sm:$0xff]
        %v1492 = vld [vmem:[%s4 + $0x78] sm:$0xff]
        %1494 = vset.pattern.permute.xlu0 0
        %1495 = vperm.xlu0 %1494, %v1477
        %v1496 = vpop.permute.xlu0 %1495
        %1499 = vset.pattern.permute.xlu0 0
        %1500 = vperm.xlu0 %1499, %v1478
        %v1501 = vpop.permute.xlu0 %1500
        %1504 = vset.pattern.permute.xlu0 0
        %1505 = vperm.xlu0 %1504, %v1479
        %v1506 = vpop.permute.xlu0 %1505
        %1509 = vset.pattern.permute.xlu0 0
        %1510 = vperm.xlu0 %1509, %v1480
        %v1511 = vpop.permute.xlu0 %1510
        %1514 = vset.pattern.permute.xlu0 0
        %1515 = vperm.xlu0 %1514, %v1481
        %v1516 = vpop.permute.xlu0 %1515
        %1519 = vset.pattern.permute.xlu0 0
        %1520 = vperm.xlu0 %1519, %v1482
        %v1521 = vpop.permute.xlu0 %1520
        %1524 = vset.pattern.permute.xlu0 0
        %1525 = vperm.xlu0 %1524, %v1483
        %v1526 = vpop.permute.xlu0 %1525
        %1529 = vset.pattern.permute.xlu0 0
        %1530 = vperm.xlu0 %1529, %v1484
        %v1531 = vpop.permute.xlu0 %1530
        %1534 = vset.pattern.permute.xlu0 0
        %1535 = vperm.xlu0 %1534, %v1485
        %v1536 = vpop.permute.xlu0 %1535
        %1539 = vset.pattern.permute.xlu0 0
        %1540 = vperm.xlu0 %1539, %v1486
        %v1541 = vpop.permute.xlu0 %1540
        %1544 = vset.pattern.permute.xlu0 0
        %1545 = vperm.xlu0 %1544, %v1487
        %v1546 = vpop.permute.xlu0 %1545
        %1549 = vset.pattern.permute.xlu0 0
        %1550 = vperm.xlu0 %1549, %v1488
        %v1551 = vpop.permute.xlu0 %1550
        %1554 = vset.pattern.permute.xlu0 0
        %1555 = vperm.xlu0 %1554, %v1489
        %v1556 = vpop.permute.xlu0 %1555
        %1559 = vset.pattern.permute.xlu0 0
        %1560 = vperm.xlu0 %1559, %v1490
        %v1561 = vpop.permute.xlu0 %1560
        %1564 = vset.pattern.permute.xlu0 0
        %1565 = vperm.xlu0 %1564, %v1491
        %v1566 = vpop.permute.xlu0 %1565
        %1569 = vset.pattern.permute.xlu0 0
        %1570 = vperm.xlu0 %1569, %v1492
        %v1571 = vpop.permute.xlu0 %1570
        %1573 = vmatpush.msra.mxu0 %v1411
        %1574 = vmatpush.msra.mxu0 %v1409
        %1575 = vmatpush.msra.mxu0 %v1407
        %1576 = vmatpush.msra.mxu0 %v1405
        %1577 = vmatpush.msra.mxu0 %v1403
        %1578 = vmatpush.msra.mxu0 %v1401
        %1579 = vmatpush.msra.mxu0 %v1399
        %1580 = vmatpush.msra.mxu0 %v1397
        %1581 = vmatpush.msra.mxu0 %v1395
        %1582 = vmatpush.msra.mxu0 %v1393
        %1583 = vmatpush.msra.mxu0 %v1391
        %1584 = vmatpush.msra.mxu0 %v1389
        %1585 = vmatpush.msra.mxu0 %v1387
        %1586 = vmatpush.msra.mxu0 %v1385
        %1587 = vmatpush.msra.mxu0 %v1383
        %1588 = vmatpush.msra.mxu0 %v1381
        %1589 = vmatmul.f32.gmra.mxu0 %v1445
        %v1590 = vpop.f32.mrf.mxu0
        %v1591 = vadd.f32 %v1496, %v1590
        %1592 = vmatmul.f32.gmra.mxu0 %v1447
        %v1593 = vpop.f32.mrf.mxu0
        %v1594 = vadd.f32 %v1501, %v1593
        %1595 = vmatmul.f32.gmra.mxu0 %v1449
        %v1596 = vpop.f32.mrf.mxu0
        %v1597 = vadd.f32 %v1506, %v1596
        %1598 = vmatmul.f32.gmra.mxu0 %v1451
        %v1599 = vpop.f32.mrf.mxu0
        %v1600 = vadd.f32 %v1511, %v1599
        %1601 = vmatmul.f32.gmra.mxu0 %v1453
        %v1602 = vpop.f32.mrf.mxu0
        %v1603 = vadd.f32 %v1516, %v1602
        %1604 = vmatmul.f32.gmra.mxu0 %v1455
        %v1605 = vpop.f32.mrf.mxu0
        %v1606 = vadd.f32 %v1521, %v1605
        %1607 = vmatmul.f32.gmra.mxu0 %v1457
        %v1608 = vpop.f32.mrf.mxu0
        %v1609 = vadd.f32 %v1526, %v1608
        %1610 = vmatmul.f32.gmra.mxu0 %v1459
        %v1611 = vpop.f32.mrf.mxu0
        %v1612 = vadd.f32 %v1531, %v1611
        %1613 = vmatmul.f32.gmra.mxu0 %v1461
        %v1614 = vpop.f32.mrf.mxu0
        %v1615 = vadd.f32 %v1536, %v1614
        %1616 = vmatmul.f32.gmra.mxu0 %v1463
        %v1617 = vpop.f32.mrf.mxu0
        %v1618 = vadd.f32 %v1541, %v1617
        %1619 = vmatmul.f32.gmra.mxu0 %v1465
        %v1620 = vpop.f32.mrf.mxu0
        %v1621 = vadd.f32 %v1546, %v1620
        %1622 = vmatmul.f32.gmra.mxu0 %v1467
        %v1623 = vpop.f32.mrf.mxu0
        %v1624 = vadd.f32 %v1551, %v1623
        %1625 = vmatmul.f32.gmra.mxu0 %v1469
        %v1626 = vpop.f32.mrf.mxu0
        %v1627 = vadd.f32 %v1556, %v1626
        %1628 = vmatmul.f32.gmra.mxu0 %v1471
        %v1629 = vpop.f32.mrf.mxu0
        %v1630 = vadd.f32 %v1561, %v1629
        %1631 = vmatmul.f32.gmra.mxu0 %v1473
        %v1632 = vpop.f32.mrf.mxu0
        %v1633 = vadd.f32 %v1566, %v1632
        %1634 = vmatmul.f32.gmra.mxu0 %v1475
        %v1635 = vpop.f32.mrf.mxu0
        %v1636 = vadd.f32 %v1571, %v1635
        %1637 = vdwg.mxu0
        %1638 = vmatpush.msra.mxu0 %v1443
        %1639 = vmatpush.msra.mxu0 %v1441
        %1640 = vmatpush.msra.mxu0 %v1439
        %1641 = vmatpush.msra.mxu0 %v1437
        %1642 = vmatpush.msra.mxu0 %v1435
        %1643 = vmatpush.msra.mxu0 %v1433
        %1644 = vmatpush.msra.mxu0 %v1431
        %1645 = vmatpush.msra.mxu0 %v1429
        %1646 = vmatpush.msra.mxu0 %v1427
        %1647 = vmatpush.msra.mxu0 %v1425
        %1648 = vmatpush.msra.mxu0 %v1423
        %1649 = vmatpush.msra.mxu0 %v1421
        %1650 = vmatpush.msra.mxu0 %v1419
        %1651 = vmatpush.msra.mxu0 %v1417
        %1652 = vmatpush.msra.mxu0 %v1415
        %1653 = vmatpush.msra.mxu0 %v1413
        %1654 = vmatmul.f32.gmra.mxu0 %v1446
        %v1655 = vpop.f32.mrf.mxu0
        %v1656 = vadd.f32 %v1591, %v1655
        %1657 = vmatmul.f32.gmra.mxu0 %v1448
        %v1658 = vpop.f32.mrf.mxu0
        %v1659 = vadd.f32 %v1594, %v1658
        %1660 = vmatmul.f32.gmra.mxu0 %v1450
        %v1661 = vpop.f32.mrf.mxu0
        %v1662 = vadd.f32 %v1597, %v1661
        %1663 = vmatmul.f32.gmra.mxu0 %v1452
        %v1664 = vpop.f32.mrf.mxu0
        %v1665 = vadd.f32 %v1600, %v1664
        %1666 = vmatmul.f32.gmra.mxu0 %v1454
        %v1667 = vpop.f32.mrf.mxu0
        %v1668 = vadd.f32 %v1603, %v1667
        %1669 = vmatmul.f32.gmra.mxu0 %v1456
        %v1670 = vpop.f32.mrf.mxu0
        %v1671 = vadd.f32 %v1606, %v1670
        %1672 = vmatmul.f32.gmra.mxu0 %v1458
        %v1673 = vpop.f32.mrf.mxu0
        %v1674 = vadd.f32 %v1609, %v1673
        %1675 = vmatmul.f32.gmra.mxu0 %v1460
        %v1676 = vpop.f32.mrf.mxu0
        %v1677 = vadd.f32 %v1612, %v1676
        %1678 = vmatmul.f32.gmra.mxu0 %v1462
        %v1679 = vpop.f32.mrf.mxu0
        %v1680 = vadd.f32 %v1615, %v1679
        %1681 = vmatmul.f32.gmra.mxu0 %v1464
        %v1682 = vpop.f32.mrf.mxu0
        %v1683 = vadd.f32 %v1618, %v1682
        %1684 = vmatmul.f32.gmra.mxu0 %v1466
        %v1685 = vpop.f32.mrf.mxu0
        %v1686 = vadd.f32 %v1621, %v1685
        %1687 = vmatmul.f32.gmra.mxu0 %v1468
        %v1688 = vpop.f32.mrf.mxu0
        %v1689 = vadd.f32 %v1624, %v1688
        %1690 = vmatmul.f32.gmra.mxu0 %v1470
        %v1691 = vpop.f32.mrf.mxu0
        %v1692 = vadd.f32 %v1627, %v1691
        %1693 = vmatmul.f32.gmra.mxu0 %v1472
        %v1694 = vpop.f32.mrf.mxu0
        %v1695 = vadd.f32 %v1630, %v1694
        %1696 = vmatmul.f32.gmra.mxu0 %v1474
        %v1697 = vpop.f32.mrf.mxu0
        %v1698 = vadd.f32 %v1633, %v1697
        %1699 = vmatmul.f32.gmra.mxu0 %v1476
        %v1700 = vpop.f32.mrf.mxu0
        %v1701 = vadd.f32 %v1636, %v1700
        %1702 = vdwg.mxu0
        %1703 = vmatpush.msra.mxu0 %v1412
        %1704 = vmatpush.msra.mxu0 %v1410
        %1705 = vmatpush.msra.mxu0 %v1408
        %1706 = vmatpush.msra.mxu0 %v1406
        %1707 = vmatpush.msra.mxu0 %v1404
        %1708 = vmatpush.msra.mxu0 %v1402
        %1709 = vmatpush.msra.mxu0 %v1400
        %1710 = vmatpush.msra.mxu0 %v1398
        %1711 = vmatpush.msra.mxu0 %v1396
        %1712 = vmatpush.msra.mxu0 %v1394
        %1713 = vmatpush.msra.mxu0 %v1392
        %1714 = vmatpush.msra.mxu0 %v1390
        %1715 = vmatpush.msra.mxu0 %v1388
        %1716 = vmatpush.msra.mxu0 %v1386
        %1717 = vmatpush.msra.mxu0 %v1384
        %1718 = vmatpush.msra.mxu0 %v1382
        %1719 = vmatmul.f32.gmra.mxu0 %v1445
        %v1720 = vpop.f32.mrf.mxu0
        %v1721 = vadd.f32 %v1496, %v1720
        %1722 = vmatmul.f32.gmra.mxu0 %v1447
        %v1723 = vpop.f32.mrf.mxu0
        %v1724 = vadd.f32 %v1501, %v1723
        %1725 = vmatmul.f32.gmra.mxu0 %v1449
        %v1726 = vpop.f32.mrf.mxu0
        %v1727 = vadd.f32 %v1506, %v1726
        %1728 = vmatmul.f32.gmra.mxu0 %v1451
        %v1729 = vpop.f32.mrf.mxu0
        %v1730 = vadd.f32 %v1511, %v1729
        %1731 = vmatmul.f32.gmra.mxu0 %v1453
        %v1732 = vpop.f32.mrf.mxu0
        %v1733 = vadd.f32 %v1516, %v1732
        %1734 = vmatmul.f32.gmra.mxu0 %v1455
        %v1735 = vpop.f32.mrf.mxu0
        %v1736 = vadd.f32 %v1521, %v1735
        %1737 = vmatmul.f32.gmra.mxu0 %v1457
        %v1738 = vpop.f32.mrf.mxu0
        %v1739 = vadd.f32 %v1526, %v1738
        %1740 = vmatmul.f32.gmra.mxu0 %v1459
        %v1741 = vpop.f32.mrf.mxu0
        %v1742 = vadd.f32 %v1531, %v1741
        %1743 = vmatmul.f32.gmra.mxu0 %v1461
        %v1744 = vpop.f32.mrf.mxu0
        %v1745 = vadd.f32 %v1536, %v1744
        %1746 = vmatmul.f32.gmra.mxu0 %v1463
        %v1747 = vpop.f32.mrf.mxu0
        %v1748 = vadd.f32 %v1541, %v1747
        %1749 = vmatmul.f32.gmra.mxu0 %v1465
        %v1750 = vpop.f32.mrf.mxu0
        %v1751 = vadd.f32 %v1546, %v1750
        %1752 = vmatmul.f32.gmra.mxu0 %v1467
        %v1753 = vpop.f32.mrf.mxu0
        %v1754 = vadd.f32 %v1551, %v1753
        %1755 = vmatmul.f32.gmra.mxu0 %v1469
        %v1756 = vpop.f32.mrf.mxu0
        %v1757 = vadd.f32 %v1556, %v1756
        %1758 = vmatmul.f32.gmra.mxu0 %v1471
        %v1759 = vpop.f32.mrf.mxu0
        %v1760 = vadd.f32 %v1561, %v1759
        %1761 = vmatmul.f32.gmra.mxu0 %v1473
        %v1762 = vpop.f32.mrf.mxu0
        %v1763 = vadd.f32 %v1566, %v1762
        %1764 = vmatmul.f32.gmra.mxu0 %v1475
        %v1765 = vpop.f32.mrf.mxu0
        %v1766 = vadd.f32 %v1571, %v1765
        %1767 = vdwg.mxu0
        %1768 = vmatpush.msra.mxu0 %v1444
        %1769 = vmatpush.msra.mxu0 %v1442
        %1770 = vmatpush.msra.mxu0 %v1440
        %1771 = vmatpush.msra.mxu0 %v1438
        %1772 = vmatpush.msra.mxu0 %v1436
        %1773 = vmatpush.msra.mxu0 %v1434
        %1774 = vmatpush.msra.mxu0 %v1432
        %1775 = vmatpush.msra.mxu0 %v1430
        %1776 = vmatpush.msra.mxu0 %v1428
        %1777 = vmatpush.msra.mxu0 %v1426
        %1778 = vmatpush.msra.mxu0 %v1424
        %1779 = vmatpush.msra.mxu0 %v1422
        %1780 = vmatpush.msra.mxu0 %v1420
        %1781 = vmatpush.msra.mxu0 %v1418
        %1782 = vmatpush.msra.mxu0 %v1416
        %1783 = vmatpush.msra.mxu0 %v1414
        %1784 = vmatmul.f32.gmra.mxu0 %v1446
        %v1785 = vpop.f32.mrf.mxu0
        %v1786 = vadd.f32 %v1721, %v1785
        %1787 = vmatmul.f32.gmra.mxu0 %v1448
        %v1788 = vpop.f32.mrf.mxu0
        %v1789 = vadd.f32 %v1724, %v1788
        %1790 = vmatmul.f32.gmra.mxu0 %v1450
        %v1791 = vpop.f32.mrf.mxu0
        %v1792 = vadd.f32 %v1727, %v1791
        %1793 = vmatmul.f32.gmra.mxu0 %v1452
        %v1794 = vpop.f32.mrf.mxu0
        %v1795 = vadd.f32 %v1730, %v1794
        %1796 = vmatmul.f32.gmra.mxu0 %v1454
        %v1797 = vpop.f32.mrf.mxu0
        %v1798 = vadd.f32 %v1733, %v1797
        %1799 = vmatmul.f32.gmra.mxu0 %v1456
        %v1800 = vpop.f32.mrf.mxu0
        %v1801 = vadd.f32 %v1736, %v1800
        %1802 = vmatmul.f32.gmra.mxu0 %v1458
        %v1803 = vpop.f32.mrf.mxu0
        %v1804 = vadd.f32 %v1739, %v1803
        %1805 = vmatmul.f32.gmra.mxu0 %v1460
        %v1806 = vpop.f32.mrf.mxu0
        %v1807 = vadd.f32 %v1742, %v1806
        %1808 = vmatmul.f32.gmra.mxu0 %v1462
        %v1809 = vpop.f32.mrf.mxu0
        %v1810 = vadd.f32 %v1745, %v1809
        %1811 = vmatmul.f32.gmra.mxu0 %v1464
        %v1812 = vpop.f32.mrf.mxu0
        %v1813 = vadd.f32 %v1748, %v1812
        %1814 = vmatmul.f32.gmra.mxu0 %v1466
        %v1815 = vpop.f32.mrf.mxu0
        %v1816 = vadd.f32 %v1751, %v1815
        %1817 = vmatmul.f32.gmra.mxu0 %v1468
        %v1818 = vpop.f32.mrf.mxu0
        %v1819 = vadd.f32 %v1754, %v1818
        %1820 = vmatmul.f32.gmra.mxu0 %v1470
        %v1821 = vpop.f32.mrf.mxu0
        %v1822 = vadd.f32 %v1757, %v1821
        %1823 = vmatmul.f32.gmra.mxu0 %v1472
        %v1824 = vpop.f32.mrf.mxu0
        %v1825 = vadd.f32 %v1760, %v1824
        %1826 = vmatmul.f32.gmra.mxu0 %v1474
        %v1827 = vpop.f32.mrf.mxu0
        %v1828 = vadd.f32 %v1763, %v1827
        %1829 = vmatmul.f32.gmra.mxu0 %v1476
        %v1830 = vpop.f32.mrf.mxu0
        %v1831 = vadd.f32 %v1766, %v1830
        %1832 = vdwg.mxu0
        %v1833 = vmax.f32 %v1656, 0.0
        %v1834 = vmax.f32 %v1786, 0.0
        %v1835 = vmax.f32 %v1659, 0.0
        %v1836 = vmax.f32 %v1789, 0.0
        %v1837 = vmax.f32 %v1662, 0.0
        %v1838 = vmax.f32 %v1792, 0.0
        %v1839 = vmax.f32 %v1665, 0.0
        %v1840 = vmax.f32 %v1795, 0.0
        %v1841 = vmax.f32 %v1668, 0.0
        %v1842 = vmax.f32 %v1798, 0.0
        %v1843 = vmax.f32 %v1671, 0.0
        %v1844 = vmax.f32 %v1801, 0.0
        %v1845 = vmax.f32 %v1674, 0.0
        %v1846 = vmax.f32 %v1804, 0.0
        %v1847 = vmax.f32 %v1677, 0.0
        %v1848 = vmax.f32 %v1807, 0.0
        %v1849 = vmax.f32 %v1680, 0.0
        %v1850 = vmax.f32 %v1810, 0.0
        %v1851 = vmax.f32 %v1683, 0.0
        %v1852 = vmax.f32 %v1813, 0.0
        %v1853 = vmax.f32 %v1686, 0.0
        %v1854 = vmax.f32 %v1816, 0.0
        %v1855 = vmax.f32 %v1689, 0.0
        %v1856 = vmax.f32 %v1819, 0.0
        %v1857 = vmax.f32 %v1692, 0.0
        %v1858 = vmax.f32 %v1822, 0.0
        %v1859 = vmax.f32 %v1695, 0.0
        %v1860 = vmax.f32 %v1825, 0.0
        %v1861 = vmax.f32 %v1698, 0.0
        %v1862 = vmax.f32 %v1828, 0.0
        %v1863 = vmax.f32 %v1701, 0.0
        %v1864 = vmax.f32 %v1831, 0.0
        %v1865 = vld [vmem:[%s5] sm:$0x1]
        %s1866 = sld [smem:[#allocation2]]
        %v1867 = vstv %s1866
        %1868 = vmatpush.msra.mxu0 %v1863
        %1869 = vmatpush.msra.mxu0 %v1861
        %1870 = vmatpush.msra.mxu0 %v1859
        %1871 = vmatpush.msra.mxu0 %v1857
        %1872 = vmatpush.msra.mxu0 %v1855
        %1873 = vmatpush.msra.mxu0 %v1853
        %1874 = vmatpush.msra.mxu0 %v1851
        %1875 = vmatpush.msra.mxu0 %v1849
        %1876 = vmatpush.msra.mxu0 %v1847
        %1877 = vmatpush.msra.mxu0 %v1845
        %1878 = vmatpush.msra.mxu0 %v1843
        %1879 = vmatpush.msra.mxu0 %v1841
        %1880 = vmatpush.msra.mxu0 %v1839
        %1881 = vmatpush.msra.mxu0 %v1837
        %1882 = vmatpush.msra.mxu0 %v1835
        %1883 = vmatpush.msra.mxu0 %v1833
        %1884 = vmatmul.f32.gmra.mxu0 %v1865
        %v1885 = vpop.f32.mrf.mxu0
        %v1886 = vadd.f32 %v1867, %v1885
        %1887 = vdwg.mxu0
        %1888 = vmatpush.msra.mxu0 %v1864
        %1889 = vmatpush.msra.mxu0 %v1862
        %1890 = vmatpush.msra.mxu0 %v1860
        %1891 = vmatpush.msra.mxu0 %v1858
        %1892 = vmatpush.msra.mxu0 %v1856
        %1893 = vmatpush.msra.mxu0 %v1854
        %1894 = vmatpush.msra.mxu0 %v1852
        %1895 = vmatpush.msra.mxu0 %v1850
        %1896 = vmatpush.msra.mxu0 %v1848
        %1897 = vmatpush.msra.mxu0 %v1846
        %1898 = vmatpush.msra.mxu0 %v1844
        %1899 = vmatpush.msra.mxu0 %v1842
        %1900 = vmatpush.msra.mxu0 %v1840
        %1901 = vmatpush.msra.mxu0 %v1838
        %1902 = vmatpush.msra.mxu0 %v1836
        %1903 = vmatpush.msra.mxu0 %v1834
        %1904 = vmatmul.f32.gmra.mxu0 %v1865
        %v1905 = vpop.f32.mrf.mxu0
        %v1906 = vadd.f32 %v1867, %v1905
        %1907 = vdwg.mxu0
        %v1908 = vxor.u32 %v1886, 2147483648
        %v1909 = vxor.u32 %v1906, 2147483648
        %v1910 = vmul.f32 %v1908, 1.442695
        %v1911 = vpow.pop %v1910
        %v1912 = vmul.f32 %v1909, 1.442695
        %v1913 = vpow.pop %v1912
        %v1914 = vadd.f32 %v1911, 1.0
        %v1915 = vadd.f32 %v1913, 1.0
        %v1916 = vrcp.pop %v1914
        %v1917 = vmul.f32 %v1914, %v1916
        %v1918 = vsub.f32 1.0, %v1917
        %v1919 = vmul.f32 %v1916, %v1918
        %v1920 = vadd.f32 %v1916, %v1919
        %vm1921 = vweird.f32 %v1914
        %vm1922 = vweird.f32 %v1916
        %vm1923 = vmor %vm1921, %vm1922
        %v1924 = vsel %vm1923, %v1916, %v1920
        %v1925 = vand.u32 2147483647, %v1914
        %vm1926 = vcmp.eq.f32.partialorder %v1925, 8.507059e+37
        %v1927 = vand.u32 %v1914, 2147483648
        %v1928 = vor.u32 1.1754944e-38, %v1927
        %v1929 = vsel %vm1926, %v1928, %v1924
        %v1930 = vmul.f32 1.0, %v1929
        %v1931 = vrcp.pop %v1915
        %v1932 = vmul.f32 %v1915, %v1931
        %v1933 = vsub.f32 1.0, %v1932
        %v1934 = vmul.f32 %v1931, %v1933
        %v1935 = vadd.f32 %v1931, %v1934
        %vm1936 = vweird.f32 %v1915
        %vm1937 = vweird.f32 %v1931
        %vm1938 = vmor %vm1936, %vm1937
        %v1939 = vsel %vm1938, %v1931, %v1935
        %v1940 = vand.u32 2147483647, %v1915
        %vm1941 = vcmp.eq.f32.partialorder %v1940, 8.507059e+37
        %v1942 = vand.u32 %v1915, 2147483648
        %v1943 = vor.u32 1.1754944e-38, %v1942
        %v1944 = vsel %vm1941, %v1943, %v1939
        %v1945 = vmul.f32 1.0, %v1944
        %v1948 = vrot.slane %v1945, 7
        %vm1949 = vcmask 1040384
        %v1950 = vsel %vm1949, %v1930, %v1948
        %v1952 = vlaneseq
        %vm1953 = vcmp.ge.s32.totalorder %v1952, 0
        %vm1954 = vcmp.lt.s32.totalorder %v1952, 256
        %vm1955 = vmand %vm1953, %vm1954
        %1956 = vst.msk [vmem:[%s316] sm:$0x3] %vm1955, %v1950
        %s1957 = sand.u32 %s186, 1
        %s1958 = scalar_lea.sflag [#allocation5], %s1957
        %s1959 = sand.u32 %s186, 1
        %s1960 = smul.addr %s1959, 2
        %s1961 = scalar_lea.vmem [#allocation8], %s1960
        // Predicated region
        $region57: #{tpu_custom_call.1} parent=47 // pred_check
          %p1962 = pneg %p196
        $region58: #{tpu_custom_call.1} parent=47 // pred_check_branch
          %1964 = sbr.rel (%p1962) target = $region60
        $region59: #{tpu_custom_call.1} parent=47 // pred_region
          %s1965 = smul.u32 2, %s26
          %1967 = vsyncadd %s1958, 0
          %s1968 = scalar_lea.hbm %s7, %s1965
          %s1970 = sshll.u32 %s1961, 4
          %s1971 = int_to_ptr.vmem [resolvable:$true] %s1970
          %s1972 = sshll.u32 %s1968, 4
          %s1973 = int_to_ptr.hbm [resolvable:$true] %s1972
          %1975 = dma.vmem_to_hbm [thread:$0]  %s1971, 32, %s1973, %s1958
        $region60: #{tpu_custom_call.1} parent=47 // pred_fallthru
          _
      $region48: #{tpu_custom_call.1} parent=5 // pred_fallthru
        _
      %p1976 = scmp.le.s32.totalorder 2, %s21
      // Predicated region
      $region61: #{tpu_custom_call.1} parent=5 // pred_check
        %p1977 = pneg %p1976
      $region62: #{tpu_custom_call.1} parent=5 // pred_check_branch
        %1979 = sbr.rel (%p1977) target = $region64
      $region63: #{tpu_custom_call.1} parent=5 // pred_region
        %s1980 = ssub.s32 %s21, 2
        // Predicated region
        $region65: #{tpu_custom_call.1} parent=63 // pred_check
          %p1981 = pneg %p202
        $region66: #{tpu_custom_call.1} parent=63 // pred_check_branch
          %1983 = sbr.rel (%p1981) target = $region68
        $region67: #{tpu_custom_call.1} parent=63 // pred_region
          %s1984 = sand.u32 %s187, 1
          %s1985 = scalar_lea.sflag [#allocation5], %s1984
          %s1986 = sand.u32 %s187, 1
          %s1987 = smul.addr %s1986, 2
          %s1988 = scalar_lea.vmem [#allocation8], %s1987
          %1990 = dma.done %s1985, 32
        $region68: #{tpu_custom_call.1} parent=63 // pred_fallthru
          _
      $region64: #{tpu_custom_call.1} parent=5 // pred_fallthru
        _
    $region6: #{tpu_custom_call.1} parent=1 // loop_footer
      %s25 = sadd.s32 1, %s21
    $region7: #{tpu_custom_call.1} parent=1 // loop_footer_branch
      %20 = sbr.rel target = $region3
    $region8: #{tpu_custom_call.1} parent=1 // loop_exit
      _
    %1991 = vsyncpa [#allocation4], 1
    %s1992 = scalar_lea.sflag [#allocation4], 1
    %1993 = vsyncpa %s1992, 1
    %1994 = vsyncpa [#allocation7], 1
    %1995 = vsyncpa [#allocation5], 1
    %s1996 = scalar_lea.sflag [#allocation5], 1
    %1997 = vsyncpa %s1996, 1

</llo_original>
